<compile_context>
chip_gen: v6e
topology: v6e:2x2x1
jax: 0.10.0
libtpu: 0.0.40
codegen_flags: <defaults>
</compile_context>

<pallas_src>
import jax
import jax.numpy as jnp
import numpy as np
from jax import lax
from jax.experimental import pallas as pl
from jax.experimental.pallas import tpu as pltpu

NODE_DIM, EDGE_DIM, GLOBAL_DIM = 8, 4, 1
HIDDEN = 32
NUM_LAYERS = 3


def _vmem_specs(n):
    return [pl.BlockSpec(memory_space=pltpu.MemorySpace.VMEM) for _ in range(n)]


# ----------------------------- fused kernel ---------------------------------

def fused_forward_kernel(
        x_ref, ea_ref, gft_ref, gsd_ref, poolt_ref,
        emb_w_ref, emb_b_ref, mp_w_ref, mp_b_ref, ro_w_ref, ro_b_ref,
        o_ref):
    f32, bf16 = jnp.float32, jnp.bfloat16
    H = HIDDEN
    n = x_ref.shape[0]
    # contract dim 0 of both operands (A^T @ B) — same pattern as the scatter-add
    dd = (((0,), (0,)), ((), ()))

    emb_w = emb_w_ref[...]                  # [NODE+EDGE+GLOBAL, H]   bf16
    emb_b = emb_b_ref[...]                  # [2, H]                  f32
    gsd = gsd_ref[...]                      # [E, 2N] = [gdst | gsrc] bf16

    # --- embeddings ---------------------------------------------------------
    h = jnp.dot(x_ref[...], emb_w[0:NODE_DIM, :],
                preferred_element_type=f32) + emb_b[0:1, :]                    # [N, H] f32
    e_emb = jnp.dot(ea_ref[...], emb_w[NODE_DIM:NODE_DIM + EDGE_DIM, :],
                    preferred_element_type=f32) + emb_b[1:2, :]                # [E, H] f32
    e16 = e_emb.astype(bf16)
    # global embedding kept transposed ([H, B]); its bias is folded into the
    # readout layer-1 bias host-side (exact fold: no nonlinearity in between).
    gT = lax.dot_general(emb_w[NODE_DIM + EDGE_DIM:NODE_DIM + EDGE_DIM + GLOBAL_DIM, :],
                         gft_ref[...], dimension_numbers=dd,
                         preferred_element_type=f32)                           # [H, B] f32

    # --- message-passing layers (statically unrolled) -----------------------
    for l in range(NUM_LAYERS):
        wl = mp_w_ref[l]                    # [H, 7H] bf16: w1i|w1j|u1x | w1e | w2 | u1a | u2
        bl = mp_b_ref[l]                    # [4, H]  f32 : b1, b2, ub1, ub2
        w1iju = wl[:, 0:3 * H]
        w1e = wl[:, 3 * H:4 * H]
        w2 = wl[:, 4 * H:5 * H]
        u1a = wl[:, 5 * H:6 * H]
        u2 = wl[:, 6 * H:7 * H]

        h16 = h.astype(bf16)
        # one wide projection instead of three K=H matmuls
        proj = jnp.dot(h16, w1iju, preferred_element_type=f32)                 # [N, 3H]
        # project-then-gather: x_i@w1i + x_j@w1j == [gdst|gsrc] @ [h@w1i ; h@w1j]
        hcat = jnp.concatenate([proj[:, 0:H], proj[:, H:2 * H]],
                               axis=0).astype(bf16)                            # [2N, H]
        gathered = jnp.dot(gsd, hcat, preferred_element_type=f32)              # [E, H]
        ep = jnp.dot(e16, w1e, preferred_element_type=f32)                     # [E, H]
        m = jnp.maximum(gathered + ep + bl[0:1, :], 0.0)                       # [E, H] f32
        msg = jnp.dot(m.astype(bf16), w2, preferred_element_type=f32) + bl[1:2, :]
        # scatter-add to destination nodes: contract gdst over the edge axis
        aggr = lax.dot_general(gsd[:, 0:n], msg.astype(bf16),
                               dimension_numbers=dd,
                               preferred_element_type=f32)                     # [N, H]
        u = jnp.maximum(proj[:, 2 * H:3 * H]
                        + jnp.dot(aggr.astype(bf16), u1a, preferred_element_type=f32)
                        + bl[2:3, :], 0.0)                                     # [N, H]
        h = h + jnp.dot(u.astype(bf16), u2, preferred_element_type=f32) + bl[3:4, :]

    # --- readout (transposed: [features, graphs] -> lane-dense output) ------
    ro_w = ro_w_ref[...]                    # [2H, H + H//2 + 1] bf16
    ro_b = ro_b_ref[...]                    # [H, 3]             f32 (bias columns)
    pooledT = lax.dot_general(h.astype(bf16), poolt_ref[...],
                              dimension_numbers=dd,
                              preferred_element_type=f32)                      # [H, B]
    catT = jnp.concatenate([pooledT, gT], axis=0).astype(bf16)                 # [2H, B]
    z = jnp.maximum(
        lax.dot_general(ro_w[:, 0:H], catT, dimension_numbers=dd,
                        preferred_element_type=f32) + ro_b[:, 0:1], 0.0)       # [H, B]
    z = jnp.maximum(
        lax.dot_general(ro_w[0:H, H:H + H // 2], z.astype(bf16),
                        dimension_numbers=dd,
                        preferred_element_type=f32) + ro_b[0:H // 2, 1:2], 0.0)  # [H//2, B]
    o_ref[...] = lax.dot_general(ro_w[0:H // 2, H + H // 2:], z.astype(bf16),
                                 dimension_numbers=dd,
                                 preferred_element_type=f32) + ro_b[0:1, 2:3]  # [1, B]


# ----------------------------- packing --------------------------------------

def pack_params(params):
    """Pack the logical parameter dict into the 6 slabs the kernel consumes."""
    bf16 = jnp.bfloat16
    H = HIDDEN
    mp = params["mp"]
    mp_w = jnp.concatenate(
        [mp["w1i"], mp["w1j"], mp["u1x"], mp["w1e"], mp["w2"], mp["u1a"], mp["u2"]],
        axis=-1).astype(bf16)                                                  # [L, H, 7H]
    mp_b = jnp.concatenate([mp["b1"], mp["b2"], mp["ub1"], mp["ub2"]], axis=1)  # [L, 4, H] f32

    emb_w = jnp.concatenate(
        [params["node_w"], params["edge_w"], params["glob_w"]], axis=0).astype(bf16)  # [13, H]
    emb_b = jnp.concatenate([params["node_b"], params["edge_b"]], axis=0)      # [2, H] f32

    ro = params["ro"]
    rw1 = jnp.concatenate([ro["w1p"], ro["w1g"]], axis=0)                      # [2H, H]
    rw2 = jnp.zeros((2 * H, H // 2), jnp.float32).at[:H].set(ro["w2"])
    rw3 = jnp.zeros((2 * H, 1), jnp.float32).at[:H // 2].set(ro["w3"])
    ro_w = jnp.concatenate([rw1, rw2, rw3], axis=1).astype(bf16)               # [2H, H+H//2+1]
    # fold the global-embedding bias's readout contribution into the layer-1 bias
    rb1_eff = (ro["b1"] + params["glob_b"] @ ro["w1g"]).reshape(H)
    rb2 = jnp.zeros((H,), jnp.float32).at[:H // 2].set(ro["b2"].reshape(-1))
    rb3 = jnp.zeros((H,), jnp.float32).at[:1].set(ro["b3"].reshape(-1))
    ro_b = jnp.stack([rb1_eff, rb2, rb3], axis=1)                              # [H, 3] f32
    return dict(mp_w=mp_w, mp_b=mp_b, emb_w=emb_w, emb_b=emb_b, ro_w=ro_w, ro_b=ro_b)


# ----------------------------- forward wrapper -------------------------------

def delta_ml_forward(params, x, edge_index, edge_attr, batch, global_features,
                     num_graphs):
    bf16 = jnp.bfloat16
    n = x.shape[0]
    e = edge_index.shape[1]
    H = HIDDEN

    src, dst = edge_index[0], edge_index[1]          # PyG: x_j = x[src], x_i = x[dst]
    # bf16 one-hots (0/1 exact) — also the right choice on v7x (no int MXU path)
    gdst = jax.nn.one_hot(dst, n, dtype=bf16)        # [E, N]
    gsrc = jax.nn.one_hot(src, n, dtype=bf16)        # [E, N]
    gsd = jnp.concatenate([gdst, gsrc], axis=1)      # [E, 2N] fused gather operand
    onehot_b = jax.nn.one_hot(batch, num_graphs, dtype=jnp.float32)            # [N, B]
    counts = jnp.maximum(onehot_b.sum(axis=0), 1.0)  # guard empty graphs (reference -> NaN)
    poolt = (onehot_b / counts[None, :]).astype(bf16)                          # [N, B]

    packed = pack_params(params)
    x16 = x.astype(bf16)
    ea16 = edge_attr.astype(bf16)
    gft = global_features.T.astype(bf16)                                       # [G, B]

    operands = (x16, ea16, gft, gsd, poolt,
                packed["emb_w"], packed["emb_b"], packed["mp_w"], packed["mp_b"],
                packed["ro_w"], packed["ro_b"])

    macs = (n * NODE_DIM * H + e * EDGE_DIM * H + GLOBAL_DIM * H * num_graphs
            + NUM_LAYERS * (n * H * 3 * H + e * 2 * n * H + 2 * e * H * H
                            + e * n * H + 2 * n * H * H)
            + n * H * num_graphs
            + (2 * H * H + H * (H // 2) + (H // 2)) * num_graphs)
    bytes_accessed = int(sum(int(np.prod(a.shape)) * a.dtype.itemsize for a in operands)
                         + num_graphs * 4)
    # explicit scoped-VMEM budget, portable across 16/32/32 MiB defaults; generous
    # headroom for f32 intermediates but far under v7x's 64 MiB physical VMEM.
    vmem_limit = int(min(48 * 1024 * 1024, max(2 * 1024 * 1024, 32 * bytes_accessed)))

    out_t = pl.pallas_call(
        fused_forward_kernel,
        out_shape=jax.ShapeDtypeStruct((1, num_graphs), jnp.float32),  # lane-dense output
        in_specs=_vmem_specs(len(operands)),
        out_specs=pl.BlockSpec(memory_space=pltpu.MemorySpace.VMEM),
        compiler_params=pltpu.CompilerParams(vmem_limit_bytes=vmem_limit),
        cost_estimate=pl.CostEstimate(flops=2 * macs, transcendentals=0,
                                      bytes_accessed=bytes_accessed),
    )(*operands)
    return out_t.T                                                             # [num_graphs, 1]


# ----------------------------- parameters -----------------------------------

def _lin(key, d_in, d_out):
    kw, kb = jax.random.split(key)
    w = 0.1 * jax.random.normal(kw, (d_in, d_out), jnp.float32)
    b = 0.1 * jax.random.normal(kb, (1, d_out), jnp.float32)
    return w, b


def init_params(key):
    ks = jax.random.split(key, 8 + NUM_LAYERS)
    p = {}
    p["node_w"], p["node_b"] = _lin(ks[0], NODE_DIM, HIDDEN)
    p["edge_w"], p["edge_b"] = _lin(ks[1], EDGE_DIM, HIDDEN)
    p["glob_w"], p["glob_b"] = _lin(ks[2], GLOBAL_DIM, HIDDEN)

    layers = []
    for l in range(NUM_LAYERS):
        kl = jax.random.split(ks[3 + l], 4)
        # message_nn: Linear(3H, H) split by input chunk [x_i | x_j | e], ReLU, Linear(H, H)
        w1, b1 = _lin(kl[0], 3 * HIDDEN, HIDDEN)
        w2, b2 = _lin(kl[1], HIDDEN, HIDDEN)
        # update_nn: Linear(2H, H) split by input chunk [x | aggr], ReLU, Linear(H, H)
        u1, ub1 = _lin(kl[2], 2 * HIDDEN, HIDDEN)
        u2, ub2 = _lin(kl[3], HIDDEN, HIDDEN)
        layers.append({
            "w1i": w1[:HIDDEN], "w1j": w1[HIDDEN:2 * HIDDEN], "w1e": w1[2 * HIDDEN:],
            "b1": b1, "w2": w2, "b2": b2,
            "u1x": u1[:HIDDEN], "u1a": u1[HIDDEN:], "ub1": ub1, "u2": u2, "ub2": ub2,
        })
    p["mp"] = {k: jnp.stack([layers[l][k] for l in range(NUM_LAYERS)], axis=0)
               for k in layers[0]}

    # readout_mlp: Linear(2H, H), ReLU, Linear(H, H//2), ReLU, Linear(H//2, 1)
    rw1, rb1 = _lin(ks[3 + NUM_LAYERS], 2 * HIDDEN, HIDDEN)
    rw2, rb2 = _lin(ks[4 + NUM_LAYERS], HIDDEN, HIDDEN // 2)
    rw3, rb3 = _lin(ks[5 + NUM_LAYERS], HIDDEN // 2, 1)
    p["ro"] = {"w1p": rw1[:HIDDEN], "w1g": rw1[HIDDEN:], "b1": rb1,
               "w2": rw2, "b2": rb2, "w3": rw3, "b3": rb3}
    return p


# ----------------------------- reference (pure f32) --------------------------

def _ref_forward(params, x, edge_index, edge_attr, batch, global_features, num_graphs):
    n = x.shape[0]
    src, dst = edge_index[0], edge_index[1]
    h = x @ params["node_w"] + params["node_b"]
    e_emb = edge_attr @ params["edge_w"] + params["edge_b"]
    g = global_features @ params["glob_w"] + params["glob_b"]
    for l in range(NUM_LAYERS):
        p = {k: params["mp"][k][l] for k in params["mp"]}
        x_i, x_j = h[dst], h[src]
        m = jnp.maximum(x_i @ p["w1i"] + x_j @ p["w1j"] + e_emb @ p["w1e"] + p["b1"], 0.0)
        m = m @ p["w2"] + p["b2"]
        aggr = jax.ops.segment_sum(m, dst, num_segments=n)
        u = jnp.maximum(h @ p["u1x"] + aggr @ p["u1a"] + p["ub1"], 0.0)
        h = h + (u @ p["u2"] + p["ub2"])
    pooled = jax.ops.segment_sum(h, batch, num_segments=num_graphs)
    pooled = pooled / jax.ops.segment_sum(jnp.ones((n, 1)), batch, num_segments=num_graphs)
    r = params["ro"]
    z = jnp.maximum(pooled @ r["w1p"] + g @ r["w1g"] + r["b1"], 0.0)
    z = jnp.maximum(z @ r["w2"] + r["b2"], 0.0)
    return z @ r["w3"] + r["b3"]


# ----------------------------- main -----------------------------------------

if __name__ == "__main__":
    key = jax.random.PRNGKey(0)
    kp, kx, ke, kg = jax.random.split(key, 4)

    # 2 graphs of 8 nodes each, ring edges in both directions (32 edges total)
    N, B = 16, 2
    batch = jnp.array([0] * 8 + [1] * 8, dtype=jnp.int32)
    edges = []
    for off in (0, 8):
        for i in range(8):
            edges.append((off + i, off + (i + 1) % 8))
            edges.append((off + (i + 1) % 8, off + i))
    edge_index = jnp.array(np.array(edges, dtype=np.int32).T)          # [2, E]
    E = edge_index.shape[1]

    x = jax.random.normal(kx, (N, NODE_DIM), jnp.float32)
    edge_attr = jax.random.normal(ke, (E, EDGE_DIM), jnp.float32)
    global_features = jax.random.normal(kg, (B, GLOBAL_DIM), jnp.float32)

    params = init_params(kp)

    out = delta_ml_forward(params, x, edge_index, edge_attr, batch,
                           global_features, num_graphs=B)
    out = jax.block_until_ready(out)
    ref = _ref_forward(params, x, edge_index, edge_attr, batch,
                       global_features, num_graphs=B)

    assert out.shape == (B, 1), out.shape
    # bf16 matmul operands (f32 accumulation) -> tolerance loosened from 1e-4
    np.testing.assert_allclose(np.asarray(out), np.asarray(ref), rtol=5e-2, atol=5e-2)
    print("KERNEL_OK")
</pallas_src>

<mosaic_0001>
module attributes {stable_mosaic.version = 11 : i64} {
  func.func @fused_forward_kernel(%arg0: memref<16x8xbf16, #tpu.memory_space<vmem>>, %arg1: memref<32x4xbf16, #tpu.memory_space<vmem>>, %arg2: memref<1x2xbf16, #tpu.memory_space<vmem>>, %arg3: memref<32x32xbf16, #tpu.memory_space<vmem>>, %arg4: memref<16x2xbf16, #tpu.memory_space<vmem>>, %arg5: memref<13x32xbf16, #tpu.memory_space<vmem>>, %arg6: memref<2x32xf32, #tpu.memory_space<vmem>>, %arg7: memref<3x32x224xbf16, #tpu.memory_space<vmem>>, %arg8: memref<3x4x32xf32, #tpu.memory_space<vmem>>, %arg9: memref<64x49xbf16, #tpu.memory_space<vmem>>, %arg10: memref<32x3xf32, #tpu.memory_space<vmem>>, %arg11: memref<1x2xf32, #tpu.memory_space<vmem>>) attributes {dimension_semantics = [], scalar_prefetch = 0 : i64, scratch_operands = 0 : i64, tpu.core_type = #tpu.core_type<tc>} {
    %c0 = arith.constant 0 : index
    %c0_0 = arith.constant 0 : index
    %0 = vector.load %arg5[%c0, %c0_0] : memref<13x32xbf16, #tpu.memory_space<vmem>>, vector<13x32xbf16>
    %c0_1 = arith.constant 0 : index
    %c0_2 = arith.constant 0 : index
    %1 = vector.load %arg6[%c0_1, %c0_2] : memref<2x32xf32, #tpu.memory_space<vmem>>, vector<2x32xf32>
    %c0_3 = arith.constant 0 : index
    %c0_4 = arith.constant 0 : index
    %2 = vector.load %arg3[%c0_3, %c0_4] : memref<32x32xbf16, #tpu.memory_space<vmem>>, vector<32x32xbf16>
    %c0_5 = arith.constant 0 : index
    %c0_6 = arith.constant 0 : index
    %3 = vector.load %arg0[%c0_5, %c0_6] : memref<16x8xbf16, #tpu.memory_space<vmem>>, vector<16x8xbf16>
    %4 = vector.extract_strided_slice %0 {offsets = [0, 0], sizes = [8, 32], strides = [1, 1]} : vector<13x32xbf16> to vector<8x32xbf16>
    %cst = arith.constant dense<0.000000e+00> : vector<16x32xf32>
    %5 = tpu.matmul %3, %4, %cst {dimension_numbers = #tpu.dot_dimension_numbers<[1], [0], [0], [1], [0, 0, 1, 1], [], []>} : vector<16x8xbf16>, vector<8x32xbf16>, vector<16x32xf32> -> vector<16x32xf32>
    %6 = vector.extract_strided_slice %1 {offsets = [0, 0], sizes = [1, 32], strides = [1, 1]} : vector<2x32xf32> to vector<1x32xf32>
    %7 = vector.broadcast %6 : vector<1x32xf32> to vector<16x32xf32>
    %8 = arith.addf %5, %7 : vector<16x32xf32>
    %c0_7 = arith.constant 0 : index
    %c0_8 = arith.constant 0 : index
    %9 = vector.load %arg1[%c0_7, %c0_8] : memref<32x4xbf16, #tpu.memory_space<vmem>>, vector<32x4xbf16>
    %10 = vector.extract_strided_slice %0 {offsets = [8, 0], sizes = [4, 32], strides = [1, 1]} : vector<13x32xbf16> to vector<4x32xbf16>
    %cst_9 = arith.constant dense<0.000000e+00> : vector<32x32xf32>
    %11 = tpu.matmul %9, %10, %cst_9 {dimension_numbers = #tpu.dot_dimension_numbers<[1], [0], [0], [1], [0, 0, 1, 1], [], []>} : vector<32x4xbf16>, vector<4x32xbf16>, vector<32x32xf32> -> vector<32x32xf32>
    %12 = vector.extract_strided_slice %1 {offsets = [1, 0], sizes = [1, 32], strides = [1, 1]} : vector<2x32xf32> to vector<1x32xf32>
    %13 = vector.broadcast %12 : vector<1x32xf32> to vector<32x32xf32>
    %14 = arith.addf %11, %13 : vector<32x32xf32>
    %15 = arith.truncf %14 : vector<32x32xf32> to vector<32x32xbf16>
    %16 = vector.extract_strided_slice %0 {offsets = [12, 0], sizes = [1, 32], strides = [1, 1]} : vector<13x32xbf16> to vector<1x32xbf16>
    %c0_10 = arith.constant 0 : index
    %c0_11 = arith.constant 0 : index
    %17 = vector.load %arg2[%c0_10, %c0_11] : memref<1x2xbf16, #tpu.memory_space<vmem>>, vector<1x2xbf16>
    %cst_12 = arith.constant dense<0.000000e+00> : vector<32x2xf32>
    %18 = tpu.matmul %16, %17, %cst_12 {dimension_numbers = #tpu.dot_dimension_numbers<[0], [0], [1], [1], [0, 1, 1, 1], [], []>} : vector<1x32xbf16>, vector<1x2xbf16>, vector<32x2xf32> -> vector<32x2xf32>
    %c0_13 = arith.constant 0 : index
    %c0_14 = arith.constant 0 : index
    %c0_15 = arith.constant 0 : index
    %19 = vector.load %arg7[%c0_13, %c0_14, %c0_15] : memref<3x32x224xbf16, #tpu.memory_space<vmem>>, vector<1x32x224xbf16>
    %20 = vector.shape_cast %19 : vector<1x32x224xbf16> to vector<32x224xbf16>
    %c0_16 = arith.constant 0 : index
    %c0_17 = arith.constant 0 : index
    %c0_18 = arith.constant 0 : index
    %21 = vector.load %arg8[%c0_16, %c0_17, %c0_18] : memref<3x4x32xf32, #tpu.memory_space<vmem>>, vector<1x4x32xf32>
    %22 = vector.shape_cast %21 : vector<1x4x32xf32> to vector<4x32xf32>
    %23 = vector.extract_strided_slice %20 {offsets = [0, 0], sizes = [32, 96], strides = [1, 1]} : vector<32x224xbf16> to vector<32x96xbf16>
    %24 = vector.extract_strided_slice %20 {offsets = [0, 96], sizes = [32, 32], strides = [1, 1]} : vector<32x224xbf16> to vector<32x32xbf16>
    %25 = vector.extract_strided_slice %20 {offsets = [0, 128], sizes = [32, 32], strides = [1, 1]} : vector<32x224xbf16> to vector<32x32xbf16>
    %26 = vector.extract_strided_slice %20 {offsets = [0, 160], sizes = [32, 32], strides = [1, 1]} : vector<32x224xbf16> to vector<32x32xbf16>
    %27 = vector.extract_strided_slice %20 {offsets = [0, 192], sizes = [32, 32], strides = [1, 1]} : vector<32x224xbf16> to vector<32x32xbf16>
    %28 = arith.truncf %8 : vector<16x32xf32> to vector<16x32xbf16>
    %cst_19 = arith.constant dense<0.000000e+00> : vector<16x96xf32>
    %29 = tpu.matmul %28, %23, %cst_19 {dimension_numbers = #tpu.dot_dimension_numbers<[1], [0], [0], [1], [0, 0, 1, 1], [], []>} : vector<16x32xbf16>, vector<32x96xbf16>, vector<16x96xf32> -> vector<16x96xf32>
    %30 = vector.extract_strided_slice %29 {offsets = [0, 0], sizes = [16, 32], strides = [1, 1]} : vector<16x96xf32> to vector<16x32xf32>
    %31 = vector.extract_strided_slice %29 {offsets = [0, 32], sizes = [16, 32], strides = [1, 1]} : vector<16x96xf32> to vector<16x32xf32>
    %32 = tpu.concatenate %30, %31 in 0 : vector<16x32xf32>, vector<16x32xf32> -> vector<32x32xf32>
    %33 = arith.truncf %32 : vector<32x32xf32> to vector<32x32xbf16>
    %cst_20 = arith.constant dense<0.000000e+00> : vector<32x32xf32>
    %34 = tpu.matmul %2, %33, %cst_20 {dimension_numbers = #tpu.dot_dimension_numbers<[1], [0], [0], [1], [0, 0, 1, 1], [], []>} : vector<32x32xbf16>, vector<32x32xbf16>, vector<32x32xf32> -> vector<32x32xf32>
    %cst_21 = arith.constant dense<0.000000e+00> : vector<32x32xf32>
    %35 = tpu.matmul %15, %24, %cst_21 {dimension_numbers = #tpu.dot_dimension_numbers<[1], [0], [0], [1], [0, 0, 1, 1], [], []>} : vector<32x32xbf16>, vector<32x32xbf16>, vector<32x32xf32> -> vector<32x32xf32>
    %36 = arith.addf %34, %35 : vector<32x32xf32>
    %37 = vector.extract_strided_slice %22 {offsets = [0, 0], sizes = [1, 32], strides = [1, 1]} : vector<4x32xf32> to vector<1x32xf32>
    %38 = vector.broadcast %37 : vector<1x32xf32> to vector<32x32xf32>
    %39 = arith.addf %36, %38 : vector<32x32xf32>
    %cst_22 = arith.constant 0.000000e+00 : f32
    %40 = vector.broadcast %cst_22 : f32 to vector<32x32xf32>
    %41 = arith.maximumf %39, %40 : vector<32x32xf32>
    %42 = arith.truncf %41 : vector<32x32xf32> to vector<32x32xbf16>
    %cst_23 = arith.constant dense<0.000000e+00> : vector<32x32xf32>
    %43 = tpu.matmul %42, %25, %cst_23 {dimension_numbers = #tpu.dot_dimension_numbers<[1], [0], [0], [1], [0, 0, 1, 1], [], []>} : vector<32x32xbf16>, vector<32x32xbf16>, vector<32x32xf32> -> vector<32x32xf32>
    %44 = vector.extract_strided_slice %22 {offsets = [1, 0], sizes = [1, 32], strides = [1, 1]} : vector<4x32xf32> to vector<1x32xf32>
    %45 = vector.broadcast %44 : vector<1x32xf32> to vector<32x32xf32>
    %46 = arith.addf %43, %45 : vector<32x32xf32>
    %47 = vector.extract_strided_slice %2 {offsets = [0, 0], sizes = [32, 16], strides = [1, 1]} : vector<32x32xbf16> to vector<32x16xbf16>
    %48 = arith.truncf %46 : vector<32x32xf32> to vector<32x32xbf16>
    %cst_24 = arith.constant dense<0.000000e+00> : vector<16x32xf32>
    %49 = tpu.matmul %47, %48, %cst_24 {dimension_numbers = #tpu.dot_dimension_numbers<[0], [0], [1], [1], [0, 1, 1, 1], [], []>} : vector<32x16xbf16>, vector<32x32xbf16>, vector<16x32xf32> -> vector<16x32xf32>
    %50 = vector.extract_strided_slice %29 {offsets = [0, 64], sizes = [16, 32], strides = [1, 1]} : vector<16x96xf32> to vector<16x32xf32>
    %51 = arith.truncf %49 : vector<16x32xf32> to vector<16x32xbf16>
    %cst_25 = arith.constant dense<0.000000e+00> : vector<16x32xf32>
    %52 = tpu.matmul %51, %26, %cst_25 {dimension_numbers = #tpu.dot_dimension_numbers<[1], [0], [0], [1], [0, 0, 1, 1], [], []>} : vector<16x32xbf16>, vector<32x32xbf16>, vector<16x32xf32> -> vector<16x32xf32>
    %53 = arith.addf %50, %52 : vector<16x32xf32>
    %54 = vector.extract_strided_slice %22 {offsets = [2, 0], sizes = [1, 32], strides = [1, 1]} : vector<4x32xf32> to vector<1x32xf32>
    %55 = vector.broadcast %54 : vector<1x32xf32> to vector<16x32xf32>
    %56 = arith.addf %53, %55 : vector<16x32xf32>
    %cst_26 = arith.constant 0.000000e+00 : f32
    %57 = vector.broadcast %cst_26 : f32 to vector<16x32xf32>
    %58 = arith.maximumf %56, %57 : vector<16x32xf32>
    %59 = arith.truncf %58 : vector<16x32xf32> to vector<16x32xbf16>
    %cst_27 = arith.constant dense<0.000000e+00> : vector<16x32xf32>
    %60 = tpu.matmul %59, %27, %cst_27 {dimension_numbers = #tpu.dot_dimension_numbers<[1], [0], [0], [1], [0, 0, 1, 1], [], []>} : vector<16x32xbf16>, vector<32x32xbf16>, vector<16x32xf32> -> vector<16x32xf32>
    %61 = arith.addf %8, %60 : vector<16x32xf32>
    %62 = vector.extract_strided_slice %22 {offsets = [3, 0], sizes = [1, 32], strides = [1, 1]} : vector<4x32xf32> to vector<1x32xf32>
    %63 = vector.broadcast %62 : vector<1x32xf32> to vector<16x32xf32>
    %64 = arith.addf %61, %63 : vector<16x32xf32>
    %c1 = arith.constant 1 : index
    %c0_28 = arith.constant 0 : index
    %c0_29 = arith.constant 0 : index
    %65 = vector.load %arg7[%c1, %c0_28, %c0_29] : memref<3x32x224xbf16, #tpu.memory_space<vmem>>, vector<1x32x224xbf16>
    %66 = vector.shape_cast %65 : vector<1x32x224xbf16> to vector<32x224xbf16>
    %c1_30 = arith.constant 1 : index
    %c0_31 = arith.constant 0 : index
    %c0_32 = arith.constant 0 : index
    %67 = vector.load %arg8[%c1_30, %c0_31, %c0_32] : memref<3x4x32xf32, #tpu.memory_space<vmem>>, vector<1x4x32xf32>
    %68 = vector.shape_cast %67 : vector<1x4x32xf32> to vector<4x32xf32>
    %69 = vector.extract_strided_slice %66 {offsets = [0, 0], sizes = [32, 96], strides = [1, 1]} : vector<32x224xbf16> to vector<32x96xbf16>
    %70 = vector.extract_strided_slice %66 {offsets = [0, 96], sizes = [32, 32], strides = [1, 1]} : vector<32x224xbf16> to vector<32x32xbf16>
    %71 = vector.extract_strided_slice %66 {offsets = [0, 128], sizes = [32, 32], strides = [1, 1]} : vector<32x224xbf16> to vector<32x32xbf16>
    %72 = vector.extract_strided_slice %66 {offsets = [0, 160], sizes = [32, 32], strides = [1, 1]} : vector<32x224xbf16> to vector<32x32xbf16>
    %73 = vector.extract_strided_slice %66 {offsets = [0, 192], sizes = [32, 32], strides = [1, 1]} : vector<32x224xbf16> to vector<32x32xbf16>
    %74 = arith.truncf %64 : vector<16x32xf32> to vector<16x32xbf16>
    %cst_33 = arith.constant dense<0.000000e+00> : vector<16x96xf32>
    %75 = tpu.matmul %74, %69, %cst_33 {dimension_numbers = #tpu.dot_dimension_numbers<[1], [0], [0], [1], [0, 0, 1, 1], [], []>} : vector<16x32xbf16>, vector<32x96xbf16>, vector<16x96xf32> -> vector<16x96xf32>
    %76 = vector.extract_strided_slice %75 {offsets = [0, 0], sizes = [16, 32], strides = [1, 1]} : vector<16x96xf32> to vector<16x32xf32>
    %77 = vector.extract_strided_slice %75 {offsets = [0, 32], sizes = [16, 32], strides = [1, 1]} : vector<16x96xf32> to vector<16x32xf32>
    %78 = tpu.concatenate %76, %77 in 0 : vector<16x32xf32>, vector<16x32xf32> -> vector<32x32xf32>
    %79 = arith.truncf %78 : vector<32x32xf32> to vector<32x32xbf16>
    %cst_34 = arith.constant dense<0.000000e+00> : vector<32x32xf32>
    %80 = tpu.matmul %2, %79, %cst_34 {dimension_numbers = #tpu.dot_dimension_numbers<[1], [0], [0], [1], [0, 0, 1, 1], [], []>} : vector<32x32xbf16>, vector<32x32xbf16>, vector<32x32xf32> -> vector<32x32xf32>
    %cst_35 = arith.constant dense<0.000000e+00> : vector<32x32xf32>
    %81 = tpu.matmul %15, %70, %cst_35 {dimension_numbers = #tpu.dot_dimension_numbers<[1], [0], [0], [1], [0, 0, 1, 1], [], []>} : vector<32x32xbf16>, vector<32x32xbf16>, vector<32x32xf32> -> vector<32x32xf32>
    %82 = arith.addf %80, %81 : vector<32x32xf32>
    %83 = vector.extract_strided_slice %68 {offsets = [0, 0], sizes = [1, 32], strides = [1, 1]} : vector<4x32xf32> to vector<1x32xf32>
    %84 = vector.broadcast %83 : vector<1x32xf32> to vector<32x32xf32>
    %85 = arith.addf %82, %84 : vector<32x32xf32>
    %cst_36 = arith.constant 0.000000e+00 : f32
    %86 = vector.broadcast %cst_36 : f32 to vector<32x32xf32>
    %87 = arith.maximumf %85, %86 : vector<32x32xf32>
    %88 = arith.truncf %87 : vector<32x32xf32> to vector<32x32xbf16>
    %cst_37 = arith.constant dense<0.000000e+00> : vector<32x32xf32>
    %89 = tpu.matmul %88, %71, %cst_37 {dimension_numbers = #tpu.dot_dimension_numbers<[1], [0], [0], [1], [0, 0, 1, 1], [], []>} : vector<32x32xbf16>, vector<32x32xbf16>, vector<32x32xf32> -> vector<32x32xf32>
    %90 = vector.extract_strided_slice %68 {offsets = [1, 0], sizes = [1, 32], strides = [1, 1]} : vector<4x32xf32> to vector<1x32xf32>
    %91 = vector.broadcast %90 : vector<1x32xf32> to vector<32x32xf32>
    %92 = arith.addf %89, %91 : vector<32x32xf32>
    %93 = vector.extract_strided_slice %2 {offsets = [0, 0], sizes = [32, 16], strides = [1, 1]} : vector<32x32xbf16> to vector<32x16xbf16>
    %94 = arith.truncf %92 : vector<32x32xf32> to vector<32x32xbf16>
    %cst_38 = arith.constant dense<0.000000e+00> : vector<16x32xf32>
    %95 = tpu.matmul %93, %94, %cst_38 {dimension_numbers = #tpu.dot_dimension_numbers<[0], [0], [1], [1], [0, 1, 1, 1], [], []>} : vector<32x16xbf16>, vector<32x32xbf16>, vector<16x32xf32> -> vector<16x32xf32>
    %96 = vector.extract_strided_slice %75 {offsets = [0, 64], sizes = [16, 32], strides = [1, 1]} : vector<16x96xf32> to vector<16x32xf32>
    %97 = arith.truncf %95 : vector<16x32xf32> to vector<16x32xbf16>
    %cst_39 = arith.constant dense<0.000000e+00> : vector<16x32xf32>
    %98 = tpu.matmul %97, %72, %cst_39 {dimension_numbers = #tpu.dot_dimension_numbers<[1], [0], [0], [1], [0, 0, 1, 1], [], []>} : vector<16x32xbf16>, vector<32x32xbf16>, vector<16x32xf32> -> vector<16x32xf32>
    %99 = arith.addf %96, %98 : vector<16x32xf32>
    %100 = vector.extract_strided_slice %68 {offsets = [2, 0], sizes = [1, 32], strides = [1, 1]} : vector<4x32xf32> to vector<1x32xf32>
    %101 = vector.broadcast %100 : vector<1x32xf32> to vector<16x32xf32>
    %102 = arith.addf %99, %101 : vector<16x32xf32>
    %cst_40 = arith.constant 0.000000e+00 : f32
    %103 = vector.broadcast %cst_40 : f32 to vector<16x32xf32>
    %104 = arith.maximumf %102, %103 : vector<16x32xf32>
    %105 = arith.truncf %104 : vector<16x32xf32> to vector<16x32xbf16>
    %cst_41 = arith.constant dense<0.000000e+00> : vector<16x32xf32>
    %106 = tpu.matmul %105, %73, %cst_41 {dimension_numbers = #tpu.dot_dimension_numbers<[1], [0], [0], [1], [0, 0, 1, 1], [], []>} : vector<16x32xbf16>, vector<32x32xbf16>, vector<16x32xf32> -> vector<16x32xf32>
    %107 = arith.addf %64, %106 : vector<16x32xf32>
    %108 = vector.extract_strided_slice %68 {offsets = [3, 0], sizes = [1, 32], strides = [1, 1]} : vector<4x32xf32> to vector<1x32xf32>
    %109 = vector.broadcast %108 : vector<1x32xf32> to vector<16x32xf32>
    %110 = arith.addf %107, %109 : vector<16x32xf32>
    %c2 = arith.constant 2 : index
    %c0_42 = arith.constant 0 : index
    %c0_43 = arith.constant 0 : index
    %111 = vector.load %arg7[%c2, %c0_42, %c0_43] : memref<3x32x224xbf16, #tpu.memory_space<vmem>>, vector<1x32x224xbf16>
    %112 = vector.shape_cast %111 : vector<1x32x224xbf16> to vector<32x224xbf16>
    %c2_44 = arith.constant 2 : index
    %c0_45 = arith.constant 0 : index
    %c0_46 = arith.constant 0 : index
    %113 = vector.load %arg8[%c2_44, %c0_45, %c0_46] : memref<3x4x32xf32, #tpu.memory_space<vmem>>, vector<1x4x32xf32>
    %114 = vector.shape_cast %113 : vector<1x4x32xf32> to vector<4x32xf32>
    %115 = vector.extract_strided_slice %112 {offsets = [0, 0], sizes = [32, 96], strides = [1, 1]} : vector<32x224xbf16> to vector<32x96xbf16>
    %116 = vector.extract_strided_slice %112 {offsets = [0, 96], sizes = [32, 32], strides = [1, 1]} : vector<32x224xbf16> to vector<32x32xbf16>
    %117 = vector.extract_strided_slice %112 {offsets = [0, 128], sizes = [32, 32], strides = [1, 1]} : vector<32x224xbf16> to vector<32x32xbf16>
    %118 = vector.extract_strided_slice %112 {offsets = [0, 160], sizes = [32, 32], strides = [1, 1]} : vector<32x224xbf16> to vector<32x32xbf16>
    %119 = vector.extract_strided_slice %112 {offsets = [0, 192], sizes = [32, 32], strides = [1, 1]} : vector<32x224xbf16> to vector<32x32xbf16>
    %120 = arith.truncf %110 : vector<16x32xf32> to vector<16x32xbf16>
    %cst_47 = arith.constant dense<0.000000e+00> : vector<16x96xf32>
    %121 = tpu.matmul %120, %115, %cst_47 {dimension_numbers = #tpu.dot_dimension_numbers<[1], [0], [0], [1], [0, 0, 1, 1], [], []>} : vector<16x32xbf16>, vector<32x96xbf16>, vector<16x96xf32> -> vector<16x96xf32>
    %122 = vector.extract_strided_slice %121 {offsets = [0, 0], sizes = [16, 32], strides = [1, 1]} : vector<16x96xf32> to vector<16x32xf32>
    %123 = vector.extract_strided_slice %121 {offsets = [0, 32], sizes = [16, 32], strides = [1, 1]} : vector<16x96xf32> to vector<16x32xf32>
    %124 = tpu.concatenate %122, %123 in 0 : vector<16x32xf32>, vector<16x32xf32> -> vector<32x32xf32>
    %125 = arith.truncf %124 : vector<32x32xf32> to vector<32x32xbf16>
    %cst_48 = arith.constant dense<0.000000e+00> : vector<32x32xf32>
    %126 = tpu.matmul %2, %125, %cst_48 {dimension_numbers = #tpu.dot_dimension_numbers<[1], [0], [0], [1], [0, 0, 1, 1], [], []>} : vector<32x32xbf16>, vector<32x32xbf16>, vector<32x32xf32> -> vector<32x32xf32>
    %cst_49 = arith.constant dense<0.000000e+00> : vector<32x32xf32>
    %127 = tpu.matmul %15, %116, %cst_49 {dimension_numbers = #tpu.dot_dimension_numbers<[1], [0], [0], [1], [0, 0, 1, 1], [], []>} : vector<32x32xbf16>, vector<32x32xbf16>, vector<32x32xf32> -> vector<32x32xf32>
    %128 = arith.addf %126, %127 : vector<32x32xf32>
    %129 = vector.extract_strided_slice %114 {offsets = [0, 0], sizes = [1, 32], strides = [1, 1]} : vector<4x32xf32> to vector<1x32xf32>
    %130 = vector.broadcast %129 : vector<1x32xf32> to vector<32x32xf32>
    %131 = arith.addf %128, %130 : vector<32x32xf32>
    %cst_50 = arith.constant 0.000000e+00 : f32
    %132 = vector.broadcast %cst_50 : f32 to vector<32x32xf32>
    %133 = arith.maximumf %131, %132 : vector<32x32xf32>
    %134 = arith.truncf %133 : vector<32x32xf32> to vector<32x32xbf16>
    %cst_51 = arith.constant dense<0.000000e+00> : vector<32x32xf32>
    %135 = tpu.matmul %134, %117, %cst_51 {dimension_numbers = #tpu.dot_dimension_numbers<[1], [0], [0], [1], [0, 0, 1, 1], [], []>} : vector<32x32xbf16>, vector<32x32xbf16>, vector<32x32xf32> -> vector<32x32xf32>
    %136 = vector.extract_strided_slice %114 {offsets = [1, 0], sizes = [1, 32], strides = [1, 1]} : vector<4x32xf32> to vector<1x32xf32>
    %137 = vector.broadcast %136 : vector<1x32xf32> to vector<32x32xf32>
    %138 = arith.addf %135, %137 : vector<32x32xf32>
    %139 = vector.extract_strided_slice %2 {offsets = [0, 0], sizes = [32, 16], strides = [1, 1]} : vector<32x32xbf16> to vector<32x16xbf16>
    %140 = arith.truncf %138 : vector<32x32xf32> to vector<32x32xbf16>
    %cst_52 = arith.constant dense<0.000000e+00> : vector<16x32xf32>
    %141 = tpu.matmul %139, %140, %cst_52 {dimension_numbers = #tpu.dot_dimension_numbers<[0], [0], [1], [1], [0, 1, 1, 1], [], []>} : vector<32x16xbf16>, vector<32x32xbf16>, vector<16x32xf32> -> vector<16x32xf32>
    %142 = vector.extract_strided_slice %121 {offsets = [0, 64], sizes = [16, 32], strides = [1, 1]} : vector<16x96xf32> to vector<16x32xf32>
    %143 = arith.truncf %141 : vector<16x32xf32> to vector<16x32xbf16>
    %cst_53 = arith.constant dense<0.000000e+00> : vector<16x32xf32>
    %144 = tpu.matmul %143, %118, %cst_53 {dimension_numbers = #tpu.dot_dimension_numbers<[1], [0], [0], [1], [0, 0, 1, 1], [], []>} : vector<16x32xbf16>, vector<32x32xbf16>, vector<16x32xf32> -> vector<16x32xf32>
    %145 = arith.addf %142, %144 : vector<16x32xf32>
    %146 = vector.extract_strided_slice %114 {offsets = [2, 0], sizes = [1, 32], strides = [1, 1]} : vector<4x32xf32> to vector<1x32xf32>
    %147 = vector.broadcast %146 : vector<1x32xf32> to vector<16x32xf32>
    %148 = arith.addf %145, %147 : vector<16x32xf32>
    %cst_54 = arith.constant 0.000000e+00 : f32
    %149 = vector.broadcast %cst_54 : f32 to vector<16x32xf32>
    %150 = arith.maximumf %148, %149 : vector<16x32xf32>
    %151 = arith.truncf %150 : vector<16x32xf32> to vector<16x32xbf16>
    %cst_55 = arith.constant dense<0.000000e+00> : vector<16x32xf32>
    %152 = tpu.matmul %151, %119, %cst_55 {dimension_numbers = #tpu.dot_dimension_numbers<[1], [0], [0], [1], [0, 0, 1, 1], [], []>} : vector<16x32xbf16>, vector<32x32xbf16>, vector<16x32xf32> -> vector<16x32xf32>
    %153 = arith.addf %110, %152 : vector<16x32xf32>
    %154 = vector.extract_strided_slice %114 {offsets = [3, 0], sizes = [1, 32], strides = [1, 1]} : vector<4x32xf32> to vector<1x32xf32>
    %155 = vector.broadcast %154 : vector<1x32xf32> to vector<16x32xf32>
    %156 = arith.addf %153, %155 : vector<16x32xf32>
    %c0_56 = arith.constant 0 : index
    %c0_57 = arith.constant 0 : index
    %157 = vector.load %arg9[%c0_56, %c0_57] : memref<64x49xbf16, #tpu.memory_space<vmem>>, vector<64x49xbf16>
    %c0_58 = arith.constant 0 : index
    %c0_59 = arith.constant 0 : index
    %158 = vector.load %arg10[%c0_58, %c0_59] : memref<32x3xf32, #tpu.memory_space<vmem>>, vector<32x3xf32>
    %159 = arith.truncf %156 : vector<16x32xf32> to vector<16x32xbf16>
    %c0_60 = arith.constant 0 : index
    %c0_61 = arith.constant 0 : index
    %160 = vector.load %arg4[%c0_60, %c0_61] : memref<16x2xbf16, #tpu.memory_space<vmem>>, vector<16x2xbf16>
    %cst_62 = arith.constant dense<0.000000e+00> : vector<32x2xf32>
    %161 = tpu.matmul %159, %160, %cst_62 {dimension_numbers = #tpu.dot_dimension_numbers<[0], [0], [1], [1], [0, 1, 1, 1], [], []>} : vector<16x32xbf16>, vector<16x2xbf16>, vector<32x2xf32> -> vector<32x2xf32>
    %162 = tpu.concatenate %161, %18 in 0 : vector<32x2xf32>, vector<32x2xf32> -> vector<64x2xf32>
    %163 = arith.truncf %162 : vector<64x2xf32> to vector<64x2xbf16>
    %164 = vector.extract_strided_slice %157 {offsets = [0, 0], sizes = [64, 32], strides = [1, 1]} : vector<64x49xbf16> to vector<64x32xbf16>
    %cst_63 = arith.constant dense<0.000000e+00> : vector<32x2xf32>
    %165 = tpu.matmul %164, %163, %cst_63 {dimension_numbers = #tpu.dot_dimension_numbers<[0], [0], [1], [1], [0, 1, 1, 1], [], []>} : vector<64x32xbf16>, vector<64x2xbf16>, vector<32x2xf32> -> vector<32x2xf32>
    %166 = vector.extract_strided_slice %158 {offsets = [0, 0], sizes = [32, 1], strides = [1, 1]} : vector<32x3xf32> to vector<32x1xf32>
    %167 = vector.broadcast %166 : vector<32x1xf32> to vector<32x2xf32>
    %168 = arith.addf %165, %167 : vector<32x2xf32>
    %cst_64 = arith.constant 0.000000e+00 : f32
    %169 = vector.broadcast %cst_64 : f32 to vector<32x2xf32>
    %170 = arith.maximumf %168, %169 : vector<32x2xf32>
    %171 = vector.extract_strided_slice %157 {offsets = [0, 32], sizes = [32, 16], strides = [1, 1]} : vector<64x49xbf16> to vector<32x16xbf16>
    %172 = arith.truncf %170 : vector<32x2xf32> to vector<32x2xbf16>
    %cst_65 = arith.constant dense<0.000000e+00> : vector<16x2xf32>
    %173 = tpu.matmul %171, %172, %cst_65 {dimension_numbers = #tpu.dot_dimension_numbers<[0], [0], [1], [1], [0, 1, 1, 1], [], []>} : vector<32x16xbf16>, vector<32x2xbf16>, vector<16x2xf32> -> vector<16x2xf32>
    %174 = vector.extract_strided_slice %158 {offsets = [0, 1], sizes = [16, 1], strides = [1, 1]} : vector<32x3xf32> to vector<16x1xf32>
    %175 = vector.broadcast %174 : vector<16x1xf32> to vector<16x2xf32>
    %176 = arith.addf %173, %175 : vector<16x2xf32>
    %cst_66 = arith.constant 0.000000e+00 : f32
    %177 = vector.broadcast %cst_66 : f32 to vector<16x2xf32>
    %178 = arith.maximumf %176, %177 : vector<16x2xf32>
    %179 = vector.extract_strided_slice %157 {offsets = [0, 48], sizes = [16, 1], strides = [1, 1]} : vector<64x49xbf16> to vector<16x1xbf16>
    %180 = arith.truncf %178 : vector<16x2xf32> to vector<16x2xbf16>
    %cst_67 = arith.constant dense<0.000000e+00> : vector<1x2xf32>
    %181 = tpu.matmul %179, %180, %cst_67 {dimension_numbers = #tpu.dot_dimension_numbers<[0], [0], [1], [1], [0, 1, 1, 1], [], []>} : vector<16x1xbf16>, vector<16x2xbf16>, vector<1x2xf32> -> vector<1x2xf32>
    %182 = vector.extract_strided_slice %158 {offsets = [0, 2], sizes = [1, 1], strides = [1, 1]} : vector<32x3xf32> to vector<1x1xf32>
    %183 = vector.broadcast %182 : vector<1x1xf32> to vector<1x2xf32>
    %184 = arith.addf %181, %183 : vector<1x2xf32>
    %c0_68 = arith.constant 0 : index
    %c0_69 = arith.constant 0 : index
    %185 = vector.load %arg11[%c0_68, %c0_69] : memref<1x2xf32, #tpu.memory_space<vmem>>, vector<1x2xf32>
    tpu.vector_store %arg11[%c0_68, %c0_69], %184 {strides = array<i32>} : memref<1x2xf32, #tpu.memory_space<vmem>>, vector<1x2xf32>,
    return
  }
}

</mosaic_0001>

<llo_original>
// kernel: tpu_custom_call.1
$region0: #{tpu_custom_call.1}
  #allocation0 [shape = 'u32[]', space=smem, size = 0x4, offset = 0x4, fixed_abs, tag = 'smem constant byte address 0x4 - core index']
  #allocation1 [shape = 'u32[144,128]{1,0:T(1,128)}', space=vmem, size = 0x12000, scoped, tag = 'internal scratch']
  %s0 = inlined_call_operand.vmem [shape: bf16[16,8], index: 0, kind: input, shape index: {}]
  %s1 = inlined_call_operand.vmem [shape: bf16[32,4], index: 1, kind: input, shape index: {}]
  %s2 = inlined_call_operand.vmem [shape: bf16[1,2], index: 2, kind: input, shape index: {}]
  %s3 = inlined_call_operand.vmem [shape: bf16[32,32], index: 3, kind: input, shape index: {}]
  %s4 = inlined_call_operand.vmem [shape: bf16[16,2], index: 4, kind: input, shape index: {}]
  %s5 = inlined_call_operand.vmem [shape: bf16[13,32], index: 5, kind: input, shape index: {}]
  %s6 = inlined_call_operand.hbm [shape: f32[2,32], index: 6, kind: input, shape index: {}]
  %s7 = inlined_call_operand.vmem [shape: bf16[3,32,224], index: 7, kind: input, shape index: {}]
  %s8 = inlined_call_operand.hbm [shape: f32[3,4,32], index: 8, kind: input, shape index: {}]
  %s9 = inlined_call_operand.vmem [shape: bf16[64,49], index: 9, kind: input, shape index: {}]
  %s10 = inlined_call_operand.vmem [shape: f32[32,3], index: 10, kind: input, shape index: {}]
  %s11 = inlined_call_operand.hbm [shape: f32[1,2], index: 11, kind: output, shape index: {}]
  %s12 = sld [smem:[#allocation0]]
  $region62: #{tpu_custom_call.1} parent=0
    _
  %s14 = ssub.s32 1, %s12
  %s15 = scalar_select 0, %s14, %s12
  $region1: #{tpu_custom_call.1} parent=0
    #allocation2 [shape = 'u8[1024]{0}', space=vmem, size = 0x400, scoped, tag = 'input window, operand 6, single buffered']
    #allocation3 [shape = 's32[1]{0}', space=sflag, size = 0x4, scoped, tag = 'scoped memory for tpu_custom_call.1']
    #allocation4 [shape = 's32[1]{0}', space=sflag, size = 0x4, scoped, tag = 'scoped memory for tpu_custom_call.1']
    #allocation5 [shape = 'u8[6144]{0}', space=vmem, size = 0x1800, scoped, tag = 'input window, operand 8, single buffered']
    #allocation6 [shape = 's32[1]{0}', space=sflag, size = 0x4, scoped, tag = 'scoped memory for tpu_custom_call.1']
    #allocation7 [shape = 'u8[512]{0}', space=vmem, size = 0x400, scoped, tag = 'output window, operand 0, single buffered']
    %16 = vsyncpa [#allocation3], 0
    %17 = vsyncpa [#allocation6], 0
    %18 = vsyncpa [#allocation4], 0
    // Predicated region
    $region2: #{tpu_custom_call.1} parent=1 // pred_check
      _
    $region3: #{tpu_custom_call.1} parent=1 // pred_check_branch
      %20 = sbr.rel (0) target = $region5
    $region4: #{tpu_custom_call.1} parent=1 // pred_region
      _
    $region5: #{tpu_custom_call.1} parent=1 // pred_fallthru
      _
    // Predicated region
    $region6: #{tpu_custom_call.1} parent=1 // pred_check
      _
    $region7: #{tpu_custom_call.1} parent=1 // pred_check_branch
      %22 = sbr.rel (0) target = $region9
    $region8: #{tpu_custom_call.1} parent=1 // pred_region
      _
    $region9: #{tpu_custom_call.1} parent=1 // pred_fallthru
      _
    // Predicated region
    $region10: #{tpu_custom_call.1} parent=1 // pred_check
      _
    $region11: #{tpu_custom_call.1} parent=1 // pred_check_branch
      %24 = sbr.rel (0) target = $region13
    $region12: #{tpu_custom_call.1} parent=1 // pred_region
      _
    $region13: #{tpu_custom_call.1} parent=1 // pred_fallthru
      _
    // Predicated region
    $region14: #{tpu_custom_call.1} parent=1 // pred_check
      _
    $region15: #{tpu_custom_call.1} parent=1 // pred_check_branch
      %26 = sbr.rel (0) target = $region17
    $region16: #{tpu_custom_call.1} parent=1 // pred_region
      _
    $region17: #{tpu_custom_call.1} parent=1 // pred_fallthru
      _
    // Predicated region
    $region18: #{tpu_custom_call.1} parent=1 // pred_check
      _
    $region19: #{tpu_custom_call.1} parent=1 // pred_check_branch
      %28 = sbr.rel (0) target = $region21
    $region20: #{tpu_custom_call.1} parent=1 // pred_region
      _
    $region21: #{tpu_custom_call.1} parent=1 // pred_fallthru
      _
    // Predicated region
    $region22: #{tpu_custom_call.1} parent=1 // pred_check
      _
    $region23: #{tpu_custom_call.1} parent=1 // pred_check_branch
      %30 = sbr.rel (0) target = $region25
    $region24: #{tpu_custom_call.1} parent=1 // pred_region
      _
    $region25: #{tpu_custom_call.1} parent=1 // pred_fallthru
      _
    // Predicated region
    $region26: #{tpu_custom_call.1} parent=1 // pred_check
      _
    $region27: #{tpu_custom_call.1} parent=1 // pred_check_branch
      %32 = sbr.rel (0) target = $region29
    $region28: #{tpu_custom_call.1} parent=1 // pred_region
      %s34 = ssub.s32 32, 32
      %35 = vsyncadd [#allocation3], %s34
      %s37 = sshll.u32 [#allocation2], 4
      %s38 = int_to_ptr.vmem [resolvable:$true] %s37
      %40 = dma.hbm_to_vmem [thread:$0]  %s6, 32, %s38, [#allocation3]
    $region29: #{tpu_custom_call.1} parent=1 // pred_fallthru
      _
    // Predicated region
    $region30: #{tpu_custom_call.1} parent=1 // pred_check
      _
    $region31: #{tpu_custom_call.1} parent=1 // pred_check_branch
      %42 = sbr.rel (0) target = $region33
    $region32: #{tpu_custom_call.1} parent=1 // pred_region
      _
    $region33: #{tpu_custom_call.1} parent=1 // pred_fallthru
      _
    // Predicated region
    $region34: #{tpu_custom_call.1} parent=1 // pred_check
      _
    $region35: #{tpu_custom_call.1} parent=1 // pred_check_branch
      %44 = sbr.rel (0) target = $region37
    $region36: #{tpu_custom_call.1} parent=1 // pred_region
      %s46 = ssub.s32 192, 192
      %47 = vsyncadd [#allocation6], %s46
      %s48 = sshll.u32 [#allocation5], 4
      %s49 = int_to_ptr.vmem [resolvable:$true] %s48
      %54 = dma.hbm_to_vmem [thread:$0]  %s8, 192, %s49, [#allocation6], 64, 64, 4
    $region37: #{tpu_custom_call.1} parent=1 // pred_fallthru
      _
    // Predicated region
    $region38: #{tpu_custom_call.1} parent=1 // pred_check
      _
    $region39: #{tpu_custom_call.1} parent=1 // pred_check_branch
      %56 = sbr.rel (0) target = $region41
    $region40: #{tpu_custom_call.1} parent=1 // pred_region
      _
    $region41: #{tpu_custom_call.1} parent=1 // pred_fallthru
      _
    // Predicated region
    $region42: #{tpu_custom_call.1} parent=1 // pred_check
      _
    $region43: #{tpu_custom_call.1} parent=1 // pred_check_branch
      %58 = sbr.rel (0) target = $region45
    $region44: #{tpu_custom_call.1} parent=1 // pred_region
      _
    $region45: #{tpu_custom_call.1} parent=1 // pred_fallthru
      _
    // Predicated region
    $region46: #{tpu_custom_call.1} parent=1 // pred_check
      _
    $region47: #{tpu_custom_call.1} parent=1 // pred_check_branch
      %60 = sbr.rel (0) target = $region49
    $region48: #{tpu_custom_call.1} parent=1 // pred_region
      %61 = dma.done [#allocation3], 32
    $region49: #{tpu_custom_call.1} parent=1 // pred_fallthru
      _
    // Predicated region
    $region50: #{tpu_custom_call.1} parent=1 // pred_check
      _
    $region51: #{tpu_custom_call.1} parent=1 // pred_check_branch
      %63 = sbr.rel (0) target = $region53
    $region52: #{tpu_custom_call.1} parent=1 // pred_region
      %64 = dma.done [#allocation6], 192
    $region53: #{tpu_custom_call.1} parent=1 // pred_fallthru
      _
    %v66 = vld [vmem:[%s5] sm:$0xf]
    %v67 = vld [vmem:[%s5 + $0x4] sm:$0x7]
    %v68 = vld [vmem:[#allocation2] sm:$0x3]
    %v69 = vld [vmem:[%s3] sm:$0xf]
    %v70 = vld [vmem:[%s3 + $0x4] sm:$0xf]
    %v71 = vld [vmem:[%s3 + $0x8] sm:$0xf]
    %v72 = vld [vmem:[%s3 + $0xc] sm:$0xf]
    %v73 = vld [vmem:[%s0] sm:$0xf]
    %v74 = vld [vmem:[%s0 + $0x4] sm:$0xf]
    %v75 = vlaneseq
    %v76 = vshrl.u32 %v75, 7
    %v77 = vsub.s32 0, %v76
    %v78 = vrot.slane %v68, %v77
    %v81 = vunpack.c.l.b16 %v73
    %v82 = vunpack.c.l.b16 %v74
    %v83 = vpack.c.b16 %v82, %v81
    %vm84 = vcmask 64512
    %v86 = vsel %vm84, %v83, 0
    %vm88 = vcmask 1043456
    %v90 = vsel %vm88, %v66, 0
    %92 = vmatprep.subr.bf16.mxu0 0
    %93 = vmatpush1.bf16.msra.mxu0 0
    %94 = vmatprep.subr.bf16.mxu0 0
    %95 = vmatpush1.bf16.msra.mxu0 0
    %96 = vmatprep.subr.bf16.mxu0 0
    %97 = vmatpush1.bf16.msra.mxu0 0
    %98 = vmatprep.subr.bf16.mxu0 0
    %99 = vmatpush1.bf16.msra.mxu0 0
    %100 = vmatprep.subr.bf16.mxu0 0
    %101 = vmatpush1.bf16.msra.mxu0 0
    %102 = vmatprep.subr.bf16.mxu0 0
    %103 = vmatpush1.bf16.msra.mxu0 0
    %104 = vmatprep.subr.bf16.mxu0 0
    %105 = vmatpush1.bf16.msra.mxu0 0
    %106 = vmatprep.subr.bf16.mxu0 0
    %107 = vmatpush1.bf16.msra.mxu0 %v90
    %108 = vmatprep.subr.bf16.mxu0 0
    %109 = vmatpush2.bf16.msra.mxu0 0
    %110 = vmatprep.subr.bf16.mxu0 0
    %111 = vmatpush2.bf16.msra.mxu0 0
    %112 = vmatprep.subr.bf16.mxu0 0
    %113 = vmatpush2.bf16.msra.mxu0 0
    %114 = vmatprep.subr.bf16.mxu0 0
    %115 = vmatpush2.bf16.msra.mxu0 0
    %116 = vmatprep.subr.bf16.mxu0 0
    %117 = vmatpush2.bf16.msra.mxu0 0
    %118 = vmatprep.subr.bf16.mxu0 0
    %119 = vmatpush2.bf16.msra.mxu0 0
    %120 = vmatprep.subr.bf16.mxu0 0
    %121 = vmatpush2.bf16.msra.mxu0 0
    %122 = vmatprep.subr.bf16.mxu0 0
    %123 = vmatpush2.bf16.msra.mxu0 0
    %124 = vmatprep.mubr.bf16.mxu0 0
    %125 = vmatmul.mubr.bf16.gmra.mxu0 %v86
    %v126 = vpop.f32.mrf.mxu0
    %v127 = vadd.f32 %v78, %v126
    %v128 = vpop.f32.mrf.mxu0
    %v129 = vpop.f32.mrf.mxu0
    %v130 = vadd.f32 %v78, %v129
    %v131 = vpop.f32.mrf.mxu0
    %132 = vdwg.mxu0
    %v133 = vld [vmem:[%s1] sm:$0xf]
    %v134 = vld [vmem:[%s1 + $0x4] sm:$0xf]
    %v135 = vld [vmem:[%s1 + $0x8] sm:$0xf]
    %v136 = vld [vmem:[%s1 + $0xc] sm:$0xf]
    %v137 = vlaneseq
    %v138 = vshrl.u32 %v137, 7
    %v139 = vsub.s32 1, %v138
    %v140 = vrot.slane %v68, %v139
    %v145 = vunpack.c.l.b16 %v133
    %v146 = vunpack.c.l.b16 %v134
    %v147 = vunpack.c.l.b16 %v135
    %v148 = vunpack.c.l.b16 %v136
    %v149 = vpack.c.b16 %v146, %v145
    %v150 = vpack.c.b16 %v148, %v147
    %vm151 = vcmask 31744
    %v153 = vsel %vm151, %v149, 0
    %v156 = vsel %vm151, %v150, 0
    %vm158 = vcmask 1041408
    %v160 = vsel %vm158, %v67, 0
    %162 = vmatprep.subr.bf16.mxu0 0
    %163 = vmatpush1.bf16.msra.mxu0 0
    %164 = vmatprep.subr.bf16.mxu0 0
    %165 = vmatpush1.bf16.msra.mxu0 0
    %166 = vmatprep.subr.bf16.mxu0 0
    %167 = vmatpush1.bf16.msra.mxu0 0
    %168 = vmatprep.subr.bf16.mxu0 0
    %169 = vmatpush1.bf16.msra.mxu0 0
    %170 = vmatprep.subr.bf16.mxu0 0
    %171 = vmatpush1.bf16.msra.mxu0 0
    %172 = vmatprep.subr.bf16.mxu0 0
    %173 = vmatpush1.bf16.msra.mxu0 0
    %174 = vmatprep.subr.bf16.mxu0 0
    %175 = vmatpush1.bf16.msra.mxu0 0
    %176 = vmatprep.subr.bf16.mxu0 0
    %177 = vmatpush1.bf16.msra.mxu0 %v160
    %178 = vmatprep.subr.bf16.mxu0 0
    %179 = vmatpush2.bf16.msra.mxu0 0
    %180 = vmatprep.subr.bf16.mxu0 0
    %181 = vmatpush2.bf16.msra.mxu0 0
    %182 = vmatprep.subr.bf16.mxu0 0
    %183 = vmatpush2.bf16.msra.mxu0 0
    %184 = vmatprep.subr.bf16.mxu0 0
    %185 = vmatpush2.bf16.msra.mxu0 0
    %186 = vmatprep.subr.bf16.mxu0 0
    %187 = vmatpush2.bf16.msra.mxu0 0
    %188 = vmatprep.subr.bf16.mxu0 0
    %189 = vmatpush2.bf16.msra.mxu0 0
    %190 = vmatprep.subr.bf16.mxu0 0
    %191 = vmatpush2.bf16.msra.mxu0 0
    %192 = vmatprep.subr.bf16.mxu0 0
    %193 = vmatpush2.bf16.msra.mxu0 0
    %194 = vmatprep.mubr.bf16.mxu0 0
    %195 = vmatmul.mubr.bf16.gmra.mxu0 %v153
    %v196 = vpop.f32.mrf.mxu0
    %v197 = vadd.f32 %v140, %v196
    %v198 = vpop.f32.mrf.mxu0
    %v199 = vpop.f32.mrf.mxu0
    %v200 = vadd.f32 %v140, %v199
    %v201 = vpop.f32.mrf.mxu0
    %202 = vmatprep.mubr.bf16.mxu0 0
    %203 = vmatmul.mubr.bf16.gmra.mxu0 %v156
    %v204 = vpop.f32.mrf.mxu0
    %v205 = vadd.f32 %v140, %v204
    %v206 = vpop.f32.mrf.mxu0
    %v207 = vpop.f32.mrf.mxu0
    %v208 = vadd.f32 %v140, %v207
    %v209 = vpop.f32.mrf.mxu0
    %210 = vdwg.mxu0
    %v211 = vpack.c.bf16 %v200, %v197
    %v212 = vpack.c.bf16 %v208, %v205
    %v213 = vld [vmem:[%s2] sm:$0x1]
    %v215 = vunpack.c.l.b16 %v67
    %v216 = vpack.c.b16 %v215, %v215
    %v217 = vrot.slane %v216, 2
    %219 = vxpose.xlu0.c.b16.start [1/8] %v217, 128
    %220 = vxpose.xlu0.c.b16.cont [2/8] 0, 128
    %221 = vxpose.xlu0.c.b16.cont [3/8] 0, 128
    %222 = vxpose.xlu0.c.b16.cont [4/8] 0, 128
    %223 = vxpose.xlu0.c.b16.cont [5/8] 0, 128
    %224 = vxpose.xlu0.c.b16.cont [6/8] 0, 128
    %225 = vxpose.xlu0.c.b16.cont [7/8] 0, 128
    %226 = vxpose.xlu0.c.b16.end [8/8] 0, 128
    %v227 = vpop.trf.xlu0
    %v228 = vpop.trf.xlu0
    %v229 = vpop.trf.xlu0
    %v230 = vpop.trf.xlu0
    %v231 = vpop.trf.xlu0
    %v232 = vpop.trf.xlu0
    %v233 = vpop.trf.xlu0
    %v234 = vpop.trf.xlu0
    %vm235 = vcmask 7168
    %v237 = vsel %vm235, %v227, 0
    %v240 = vsel %vm235, %v228, 0
    %vm242 = vcmask 1040384
    %v243 = vsel 0, 4294967295, 65535
    %v244 = vsel %vm242, %v243, 0
    %v246 = vand.u32 %v213, %v244
    %248 = vmatprep.subr.bf16.mxu0 0
    %249 = vmatpush1.bf16.msra.mxu0 0
    %250 = vmatprep.subr.bf16.mxu0 0
    %251 = vmatpush1.bf16.msra.mxu0 0
    %252 = vmatprep.subr.bf16.mxu0 0
    %253 = vmatpush1.bf16.msra.mxu0 0
    %254 = vmatprep.subr.bf16.mxu0 0
    %255 = vmatpush1.bf16.msra.mxu0 0
    %256 = vmatprep.subr.bf16.mxu0 0
    %257 = vmatpush1.bf16.msra.mxu0 0
    %258 = vmatprep.subr.bf16.mxu0 0
    %259 = vmatpush1.bf16.msra.mxu0 0
    %260 = vmatprep.subr.bf16.mxu0 0
    %261 = vmatpush1.bf16.msra.mxu0 0
    %262 = vmatprep.subr.bf16.mxu0 0
    %263 = vmatpush1.bf16.msra.mxu0 %v246
    %264 = vmatprep.subr.bf16.mxu0 0
    %265 = vmatpush2.bf16.msra.mxu0 0
    %266 = vmatprep.subr.bf16.mxu0 0
    %267 = vmatpush2.bf16.msra.mxu0 0
    %268 = vmatprep.subr.bf16.mxu0 0
    %269 = vmatpush2.bf16.msra.mxu0 0
    %270 = vmatprep.subr.bf16.mxu0 0
    %271 = vmatpush2.bf16.msra.mxu0 0
    %272 = vmatprep.subr.bf16.mxu0 0
    %273 = vmatpush2.bf16.msra.mxu0 0
    %274 = vmatprep.subr.bf16.mxu0 0
    %275 = vmatpush2.bf16.msra.mxu0 0
    %276 = vmatprep.subr.bf16.mxu0 0
    %277 = vmatpush2.bf16.msra.mxu0 0
    %278 = vmatprep.subr.bf16.mxu0 0
    %279 = vmatpush2.bf16.msra.mxu0 0
    %280 = vmatprep.mubr.bf16.mxu0 0
    %281 = vmatmul.mubr.bf16.gmra.mxu0 %v237
    %v282 = vpop.f32.mrf.mxu0
    %v283 = vadd.f32 0.0, %v282
    %v284 = vpop.f32.mrf.mxu0
    %v285 = vpop.f32.mrf.mxu0
    %v286 = vadd.f32 0.0, %v285
    %v287 = vpop.f32.mrf.mxu0
    %288 = vmatprep.mubr.bf16.mxu0 0
    %289 = vmatmul.mubr.bf16.gmra.mxu0 %v240
    %v290 = vpop.f32.mrf.mxu0
    %v291 = vadd.f32 0.0, %v290
    %v292 = vpop.f32.mrf.mxu0
    %v293 = vpop.f32.mrf.mxu0
    %v294 = vadd.f32 0.0, %v293
    %v295 = vpop.f32.mrf.mxu0
    %296 = vdwg.mxu0
    %v297 = vld [vmem:[%s7] sm:$0xff]
    %v298 = vld [vmem:[%s7 + $0x8] sm:$0xff]
    %v299 = vld [vmem:[%s7 + $0x10] sm:$0xff]
    %v300 = vld [vmem:[%s7 + $0x18] sm:$0xff]
    %v301 = vld [vmem:[#allocation5] sm:$0xf]
    %v302 = vpack.c.bf16 %v130, %v127
    %v307 = vunpack.c.l.b16 %v297
    %v308 = vunpack.c.l.b16 %v298
    %v309 = vunpack.c.l.b16 %v299
    %v310 = vunpack.c.l.b16 %v300
    %v311 = vpack.c.b16 %v308, %v307
    %v312 = vpack.c.b16 %v310, %v309
    %vm315 = vcmask 261120
    %v317 = vsel %vm315, %v302, 0
    %319 = vmatprep.subr.bf16.mxu0 0
    %320 = vmatpush1.bf16.msra.mxu0 0
    %321 = vmatprep.subr.bf16.mxu0 0
    %322 = vmatpush1.bf16.msra.mxu0 0
    %323 = vmatprep.subr.bf16.mxu0 0
    %324 = vmatpush1.bf16.msra.mxu0 0
    %325 = vmatprep.subr.bf16.mxu0 0
    %326 = vmatpush1.bf16.msra.mxu0 0
    %327 = vmatprep.subr.bf16.mxu0 0
    %328 = vmatpush1.bf16.msra.mxu0 0
    %329 = vmatprep.subr.bf16.mxu0 0
    %330 = vmatpush1.bf16.msra.mxu0 0
    %331 = vmatprep.subr.bf16.mxu0 0
    %332 = vmatpush1.bf16.msra.mxu0 %v312
    %333 = vmatprep.subr.bf16.mxu0 0
    %334 = vmatpush1.bf16.msra.mxu0 %v311
    %335 = vmatprep.subr.bf16.mxu0 0
    %336 = vmatpush2.bf16.msra.mxu0 0
    %337 = vmatprep.subr.bf16.mxu0 0
    %338 = vmatpush2.bf16.msra.mxu0 0
    %339 = vmatprep.subr.bf16.mxu0 0
    %340 = vmatpush2.bf16.msra.mxu0 0
    %341 = vmatprep.subr.bf16.mxu0 0
    %342 = vmatpush2.bf16.msra.mxu0 0
    %343 = vmatprep.subr.bf16.mxu0 0
    %344 = vmatpush2.bf16.msra.mxu0 0
    %345 = vmatprep.subr.bf16.mxu0 0
    %346 = vmatpush2.bf16.msra.mxu0 0
    %347 = vmatprep.subr.bf16.mxu0 0
    %348 = vmatpush2.bf16.msra.mxu0 0
    %349 = vmatprep.subr.bf16.mxu0 0
    %350 = vmatpush2.bf16.msra.mxu0 0
    %351 = vmatprep.mubr.bf16.mxu0 0
    %352 = vmatmul.mubr.bf16.gmra.mxu0 %v317
    %v353 = vpop.f32.mrf.mxu0
    %v354 = vadd.f32 0.0, %v353
    %v355 = vpop.f32.mrf.mxu0
    %v356 = vpop.f32.mrf.mxu0
    %v357 = vadd.f32 0.0, %v356
    %v358 = vpop.f32.mrf.mxu0
    %359 = vdwg.mxu0
    %362 = vrot.lane.b32.xlu0 %v354, 96
    %v363 = vpop.permute.xlu0 %362
    %364 = vrot.lane.b32.xlu0 %v357, 96
    %v365 = vpop.permute.xlu0 %364
    %v368 = vpack.c.bf16 %v357, %v354
    %v369 = vpack.c.bf16 %v365, %v363
    %370 = vrot.lane.b32.xlu0 %v311, 32
    %v371 = vpop.permute.xlu0 %370
    %372 = vrot.lane.b32.xlu0 %v312, 32
    %v373 = vpop.permute.xlu0 %372
    %v377 = vsel %vm315, %v211, 0
    %v380 = vsel %vm315, %v212, 0
    %382 = vmatprep.subr.bf16.mxu0 0
    %383 = vmatpush1.bf16.msra.mxu0 0
    %384 = vmatprep.subr.bf16.mxu0 0
    %385 = vmatpush1.bf16.msra.mxu0 0
    %386 = vmatprep.subr.bf16.mxu0 0
    %387 = vmatpush1.bf16.msra.mxu0 0
    %388 = vmatprep.subr.bf16.mxu0 0
    %389 = vmatpush1.bf16.msra.mxu0 0
    %390 = vmatprep.subr.bf16.mxu0 0
    %391 = vmatpush1.bf16.msra.mxu0 0
    %392 = vmatprep.subr.bf16.mxu0 0
    %393 = vmatpush1.bf16.msra.mxu0 0
    %394 = vmatprep.subr.bf16.mxu0 0
    %395 = vmatpush1.bf16.msra.mxu0 %v373
    %396 = vmatprep.subr.bf16.mxu0 0
    %397 = vmatpush1.bf16.msra.mxu0 %v371
    %398 = vmatprep.subr.bf16.mxu0 0
    %399 = vmatpush2.bf16.msra.mxu0 0
    %400 = vmatprep.subr.bf16.mxu0 0
    %401 = vmatpush2.bf16.msra.mxu0 0
    %402 = vmatprep.subr.bf16.mxu0 0
    %403 = vmatpush2.bf16.msra.mxu0 0
    %404 = vmatprep.subr.bf16.mxu0 0
    %405 = vmatpush2.bf16.msra.mxu0 0
    %406 = vmatprep.subr.bf16.mxu0 0
    %407 = vmatpush2.bf16.msra.mxu0 0
    %408 = vmatprep.subr.bf16.mxu0 0
    %409 = vmatpush2.bf16.msra.mxu0 0
    %410 = vmatprep.subr.bf16.mxu0 0
    %411 = vmatpush2.bf16.msra.mxu0 0
    %412 = vmatprep.subr.bf16.mxu0 0
    %413 = vmatpush2.bf16.msra.mxu0 0
    %414 = vmatprep.mubr.bf16.mxu0 0
    %415 = vmatmul.mubr.bf16.gmra.mxu0 %v377
    %v416 = vpop.f32.mrf.mxu0
    %v417 = vadd.f32 0.0, %v416
    %v418 = vpop.f32.mrf.mxu0
    %v419 = vpop.f32.mrf.mxu0
    %v420 = vadd.f32 0.0, %v419
    %v421 = vpop.f32.mrf.mxu0
    %422 = vmatprep.mubr.bf16.mxu0 0
    %423 = vmatmul.mubr.bf16.gmra.mxu0 %v380
    %v424 = vpop.f32.mrf.mxu0
    %v425 = vadd.f32 0.0, %v424
    %v426 = vpop.f32.mrf.mxu0
    %v427 = vpop.f32.mrf.mxu0
    %v428 = vadd.f32 0.0, %v427
    %v429 = vpop.f32.mrf.mxu0
    %430 = vdwg.mxu0
    %v435 = vunpack.c.l.b16 %v69
    %v436 = vunpack.c.l.b16 %v70
    %v437 = vunpack.c.l.b16 %v71
    %v438 = vunpack.c.l.b16 %v72
    %v439 = vpack.c.b16 %v436, %v435
    %v440 = vpack.c.b16 %v438, %v437
    %v442 = vsel %vm315, %v439, 0
    %v445 = vsel %vm315, %v440, 0
    %447 = vmatprep.subr.bf16.mxu0 0
    %448 = vmatpush1.bf16.msra.mxu0 0
    %449 = vmatprep.subr.bf16.mxu0 0
    %450 = vmatpush1.bf16.msra.mxu0 0
    %451 = vmatprep.subr.bf16.mxu0 0
    %452 = vmatpush1.bf16.msra.mxu0 0
    %453 = vmatprep.subr.bf16.mxu0 0
    %454 = vmatpush1.bf16.msra.mxu0 0
    %455 = vmatprep.subr.bf16.mxu0 0
    %456 = vmatpush1.bf16.msra.mxu0 0
    %457 = vmatprep.subr.bf16.mxu0 0
    %458 = vmatpush1.bf16.msra.mxu0 0
    %459 = vmatprep.subr.bf16.mxu0 0
    %460 = vmatpush1.bf16.msra.mxu0 %v369
    %461 = vmatprep.subr.bf16.mxu0 0
    %462 = vmatpush1.bf16.msra.mxu0 %v368
    %463 = vmatprep.subr.bf16.mxu0 0
    %464 = vmatpush2.bf16.msra.mxu0 0
    %465 = vmatprep.subr.bf16.mxu0 0
    %466 = vmatpush2.bf16.msra.mxu0 0
    %467 = vmatprep.subr.bf16.mxu0 0
    %468 = vmatpush2.bf16.msra.mxu0 0
    %469 = vmatprep.subr.bf16.mxu0 0
    %470 = vmatpush2.bf16.msra.mxu0 0
    %471 = vmatprep.subr.bf16.mxu0 0
    %472 = vmatpush2.bf16.msra.mxu0 0
    %473 = vmatprep.subr.bf16.mxu0 0
    %474 = vmatpush2.bf16.msra.mxu0 0
    %475 = vmatprep.subr.bf16.mxu0 0
    %476 = vmatpush2.bf16.msra.mxu0 0
    %477 = vmatprep.subr.bf16.mxu0 0
    %478 = vmatpush2.bf16.msra.mxu0 0
    %479 = vmatprep.mubr.bf16.mxu0 0
    %480 = vmatmul.mubr.bf16.gmra.mxu0 %v442
    %v481 = vpop.f32.mrf.mxu0
    %v482 = vadd.f32 %v417, %v481
    %v483 = vpop.f32.mrf.mxu0
    %v484 = vpop.f32.mrf.mxu0
    %v485 = vadd.f32 %v420, %v484
    %v486 = vpop.f32.mrf.mxu0
    %487 = vmatprep.mubr.bf16.mxu0 0
    %488 = vmatmul.mubr.bf16.gmra.mxu0 %v445
    %v489 = vpop.f32.mrf.mxu0
    %v490 = vadd.f32 %v425, %v489
    %v491 = vpop.f32.mrf.mxu0
    %v492 = vpop.f32.mrf.mxu0
    %v493 = vadd.f32 %v428, %v492
    %v494 = vpop.f32.mrf.mxu0
    %495 = vdwg.mxu0
    %v496 = vlaneseq
    %v497 = vshrl.u32 %v496, 7
    %v498 = vsub.s32 0, %v497
    %v499 = vrot.slane %v301, %v498
    %v500 = vadd.f32 %v482, %v499
    %v501 = vadd.f32 %v485, %v499
    %v502 = vadd.f32 %v490, %v499
    %v503 = vadd.f32 %v493, %v499
    %v504 = vmax.f32 %v500, 0.0
    %v505 = vmax.f32 %v501, 0.0
    %v506 = vmax.f32 %v502, 0.0
    %v507 = vmax.f32 %v503, 0.0
    %v508 = vpack.c.bf16 %v505, %v504
    %v509 = vpack.c.bf16 %v507, %v506
    %v510 = vlaneseq
    %v511 = vshrl.u32 %v510, 7
    %v512 = vsub.s32 1, %v511
    %v513 = vrot.slane %v301, %v512
    %v514 = vunpack.c.h.b16 %v297
    %v515 = vunpack.c.h.b16 %v298
    %v516 = vunpack.c.h.b16 %v299
    %v517 = vunpack.c.h.b16 %v300
    %v518 = vpack.c.b16 %v515, %v514
    %v519 = vpack.c.b16 %v517, %v516
    %v523 = vsel %vm315, %v508, 0
    %v526 = vsel %vm315, %v509, 0
    %528 = vmatprep.subr.bf16.mxu0 0
    %529 = vmatpush1.bf16.msra.mxu0 0
    %530 = vmatprep.subr.bf16.mxu0 0
    %531 = vmatpush1.bf16.msra.mxu0 0
    %532 = vmatprep.subr.bf16.mxu0 0
    %533 = vmatpush1.bf16.msra.mxu0 0
    %534 = vmatprep.subr.bf16.mxu0 0
    %535 = vmatpush1.bf16.msra.mxu0 0
    %536 = vmatprep.subr.bf16.mxu0 0
    %537 = vmatpush1.bf16.msra.mxu0 0
    %538 = vmatprep.subr.bf16.mxu0 0
    %539 = vmatpush1.bf16.msra.mxu0 0
    %540 = vmatprep.subr.bf16.mxu0 0
    %541 = vmatpush1.bf16.msra.mxu0 %v519
    %542 = vmatprep.subr.bf16.mxu0 0
    %543 = vmatpush1.bf16.msra.mxu0 %v518
    %544 = vmatprep.subr.bf16.mxu0 0
    %545 = vmatpush2.bf16.msra.mxu0 0
    %546 = vmatprep.subr.bf16.mxu0 0
    %547 = vmatpush2.bf16.msra.mxu0 0
    %548 = vmatprep.subr.bf16.mxu0 0
    %549 = vmatpush2.bf16.msra.mxu0 0
    %550 = vmatprep.subr.bf16.mxu0 0
    %551 = vmatpush2.bf16.msra.mxu0 0
    %552 = vmatprep.subr.bf16.mxu0 0
    %553 = vmatpush2.bf16.msra.mxu0 0
    %554 = vmatprep.subr.bf16.mxu0 0
    %555 = vmatpush2.bf16.msra.mxu0 0
    %556 = vmatprep.subr.bf16.mxu0 0
    %557 = vmatpush2.bf16.msra.mxu0 0
    %558 = vmatprep.subr.bf16.mxu0 0
    %559 = vmatpush2.bf16.msra.mxu0 0
    %560 = vmatprep.mubr.bf16.mxu0 0
    %561 = vmatmul.mubr.bf16.gmra.mxu0 %v523
    %v562 = vpop.f32.mrf.mxu0
    %v563 = vadd.f32 %v513, %v562
    %v564 = vpop.f32.mrf.mxu0
    %v565 = vpop.f32.mrf.mxu0
    %v566 = vadd.f32 %v513, %v565
    %v567 = vpop.f32.mrf.mxu0
    %568 = vmatprep.mubr.bf16.mxu0 0
    %569 = vmatmul.mubr.bf16.gmra.mxu0 %v526
    %v570 = vpop.f32.mrf.mxu0
    %v571 = vadd.f32 %v513, %v570
    %v572 = vpop.f32.mrf.mxu0
    %v573 = vpop.f32.mrf.mxu0
    %v574 = vadd.f32 %v513, %v573
    %v575 = vpop.f32.mrf.mxu0
    %576 = vdwg.mxu0
    %v577 = vpack.c.bf16 %v566, %v563
    %v578 = vpack.c.bf16 %v574, %v571
    %581 = vxpose.xlu0.c.b16.start [1/8] %v439, 128
    %582 = vxpose.xlu0.c.b16.cont [2/8] %v440, 128
    %583 = vxpose.xlu0.c.b16.cont [3/8] 0, 128
    %584 = vxpose.xlu0.c.b16.cont [4/8] 0, 128
    %585 = vxpose.xlu0.c.b16.cont [5/8] 0, 128
    %586 = vxpose.xlu0.c.b16.cont [6/8] 0, 128
    %587 = vxpose.xlu0.c.b16.cont [7/8] 0, 128
    %588 = vxpose.xlu0.c.b16.end [8/8] 0, 128
    %v589 = vpop.trf.xlu0
    %v590 = vpop.trf.xlu0
    %v591 = vpop.trf.xlu0
    %v592 = vpop.trf.xlu0
    %v593 = vpop.trf.xlu0
    %v594 = vpop.trf.xlu0
    %v595 = vpop.trf.xlu0
    %v596 = vpop.trf.xlu0
    %v598 = vsel %vm315, %v589, 0
    %600 = vmatprep.subr.bf16.mxu0 0
    %601 = vmatpush1.bf16.msra.mxu0 0
    %602 = vmatprep.subr.bf16.mxu0 0
    %603 = vmatpush1.bf16.msra.mxu0 0
    %604 = vmatprep.subr.bf16.mxu0 0
    %605 = vmatpush1.bf16.msra.mxu0 0
    %606 = vmatprep.subr.bf16.mxu0 0
    %607 = vmatpush1.bf16.msra.mxu0 0
    %608 = vmatprep.subr.bf16.mxu0 0
    %609 = vmatpush1.bf16.msra.mxu0 0
    %610 = vmatprep.subr.bf16.mxu0 0
    %611 = vmatpush1.bf16.msra.mxu0 0
    %612 = vmatprep.subr.bf16.mxu0 0
    %613 = vmatpush1.bf16.msra.mxu0 %v578
    %614 = vmatprep.subr.bf16.mxu0 0
    %615 = vmatpush1.bf16.msra.mxu0 %v577
    %616 = vmatprep.subr.bf16.mxu0 0
    %617 = vmatpush2.bf16.msra.mxu0 0
    %618 = vmatprep.subr.bf16.mxu0 0
    %619 = vmatpush2.bf16.msra.mxu0 0
    %620 = vmatprep.subr.bf16.mxu0 0
    %621 = vmatpush2.bf16.msra.mxu0 0
    %622 = vmatprep.subr.bf16.mxu0 0
    %623 = vmatpush2.bf16.msra.mxu0 0
    %624 = vmatprep.subr.bf16.mxu0 0
    %625 = vmatpush2.bf16.msra.mxu0 0
    %626 = vmatprep.subr.bf16.mxu0 0
    %627 = vmatpush2.bf16.msra.mxu0 0
    %628 = vmatprep.subr.bf16.mxu0 0
    %629 = vmatpush2.bf16.msra.mxu0 0
    %630 = vmatprep.subr.bf16.mxu0 0
    %631 = vmatpush2.bf16.msra.mxu0 0
    %632 = vmatprep.mubr.bf16.mxu0 0
    %633 = vmatmul.mubr.bf16.gmra.mxu0 %v598
    %v634 = vpop.f32.mrf.mxu0
    %v635 = vadd.f32 0.0, %v634
    %v636 = vpop.f32.mrf.mxu0
    %v637 = vpop.f32.mrf.mxu0
    %v638 = vadd.f32 0.0, %v637
    %v639 = vpop.f32.mrf.mxu0
    %640 = vdwg.mxu0
    %v641 = vpack.c.bf16 %v638, %v635
    %642 = vrot.lane.b32.xlu0 %v518, 96
    %v643 = vpop.permute.xlu0 %642
    %644 = vrot.lane.b32.xlu0 %v519, 96
    %v645 = vpop.permute.xlu0 %644
    %v649 = vsel %vm315, %v641, 0
    %651 = vmatprep.subr.bf16.mxu0 0
    %652 = vmatpush1.bf16.msra.mxu0 0
    %653 = vmatprep.subr.bf16.mxu0 0
    %654 = vmatpush1.bf16.msra.mxu0 0
    %655 = vmatprep.subr.bf16.mxu0 0
    %656 = vmatpush1.bf16.msra.mxu0 0
    %657 = vmatprep.subr.bf16.mxu0 0
    %658 = vmatpush1.bf16.msra.mxu0 0
    %659 = vmatprep.subr.bf16.mxu0 0
    %660 = vmatpush1.bf16.msra.mxu0 0
    %661 = vmatprep.subr.bf16.mxu0 0
    %662 = vmatpush1.bf16.msra.mxu0 0
    %663 = vmatprep.subr.bf16.mxu0 0
    %664 = vmatpush1.bf16.msra.mxu0 %v645
    %665 = vmatprep.subr.bf16.mxu0 0
    %666 = vmatpush1.bf16.msra.mxu0 %v643
    %667 = vmatprep.subr.bf16.mxu0 0
    %668 = vmatpush2.bf16.msra.mxu0 0
    %669 = vmatprep.subr.bf16.mxu0 0
    %670 = vmatpush2.bf16.msra.mxu0 0
    %671 = vmatprep.subr.bf16.mxu0 0
    %672 = vmatpush2.bf16.msra.mxu0 0
    %673 = vmatprep.subr.bf16.mxu0 0
    %674 = vmatpush2.bf16.msra.mxu0 0
    %675 = vmatprep.subr.bf16.mxu0 0
    %676 = vmatpush2.bf16.msra.mxu0 0
    %677 = vmatprep.subr.bf16.mxu0 0
    %678 = vmatpush2.bf16.msra.mxu0 0
    %679 = vmatprep.subr.bf16.mxu0 0
    %680 = vmatpush2.bf16.msra.mxu0 0
    %681 = vmatprep.subr.bf16.mxu0 0
    %682 = vmatpush2.bf16.msra.mxu0 0
    %683 = vmatprep.mubr.bf16.mxu0 0
    %684 = vmatmul.mubr.bf16.gmra.mxu0 %v649
    %v685 = vpop.f32.mrf.mxu0
    %v686 = vadd.f32 0.0, %v685
    %v687 = vpop.f32.mrf.mxu0
    %v688 = vpop.f32.mrf.mxu0
    %v689 = vadd.f32 0.0, %v688
    %v690 = vpop.f32.mrf.mxu0
    %691 = vdwg.mxu0
    %694 = vrot.lane.b32.xlu0 %v686, 64
    %v695 = vpop.permute.xlu0 %694
    %696 = vrot.lane.b32.xlu0 %v689, 64
    %v697 = vpop.permute.xlu0 %696
    %v700 = vadd.f32 %v354, %v695
    %v701 = vadd.f32 %v357, %v697
    %v702 = vlaneseq
    %v703 = vshrl.u32 %v702, 7
    %v704 = vsub.s32 2, %v703
    %v705 = vrot.slane %v301, %v704
    %707 = vrot.lane.b32.xlu0 %v705, 64
    %v708 = vpop.permute.xlu0 %707
    %v710 = vadd.f32 %v700, %v708
    %v711 = vadd.f32 %v701, %v708
    %v712 = vmax.f32 %v710, 0.0
    %v713 = vmax.f32 %v711, 0.0
    %v714 = vpack.c.bf16 %v713, %v712
    %716 = vrot.lane.b32.xlu0 %v714, 64
    %v717 = vpop.permute.xlu0 %716
    %718 = vrot.lane.b32.xlu0 %v518, 64
    %v719 = vpop.permute.xlu0 %718
    %720 = vrot.lane.b32.xlu0 %v519, 64
    %v721 = vpop.permute.xlu0 %720
    %v725 = vsel %vm315, %v717, 0
    %727 = vmatprep.subr.bf16.mxu0 0
    %728 = vmatpush1.bf16.msra.mxu0 0
    %729 = vmatprep.subr.bf16.mxu0 0
    %730 = vmatpush1.bf16.msra.mxu0 0
    %731 = vmatprep.subr.bf16.mxu0 0
    %732 = vmatpush1.bf16.msra.mxu0 0
    %733 = vmatprep.subr.bf16.mxu0 0
    %734 = vmatpush1.bf16.msra.mxu0 0
    %735 = vmatprep.subr.bf16.mxu0 0
    %736 = vmatpush1.bf16.msra.mxu0 0
    %737 = vmatprep.subr.bf16.mxu0 0
    %738 = vmatpush1.bf16.msra.mxu0 0
    %739 = vmatprep.subr.bf16.mxu0 0
    %740 = vmatpush1.bf16.msra.mxu0 %v721
    %741 = vmatprep.subr.bf16.mxu0 0
    %742 = vmatpush1.bf16.msra.mxu0 %v719
    %743 = vmatprep.subr.bf16.mxu0 0
    %744 = vmatpush2.bf16.msra.mxu0 0
    %745 = vmatprep.subr.bf16.mxu0 0
    %746 = vmatpush2.bf16.msra.mxu0 0
    %747 = vmatprep.subr.bf16.mxu0 0
    %748 = vmatpush2.bf16.msra.mxu0 0
    %749 = vmatprep.subr.bf16.mxu0 0
    %750 = vmatpush2.bf16.msra.mxu0 0
    %751 = vmatprep.subr.bf16.mxu0 0
    %752 = vmatpush2.bf16.msra.mxu0 0
    %753 = vmatprep.subr.bf16.mxu0 0
    %754 = vmatpush2.bf16.msra.mxu0 0
    %755 = vmatprep.subr.bf16.mxu0 0
    %756 = vmatpush2.bf16.msra.mxu0 0
    %757 = vmatprep.subr.bf16.mxu0 0
    %758 = vmatpush2.bf16.msra.mxu0 0
    %759 = vmatprep.mubr.bf16.mxu0 0
    %760 = vmatmul.mubr.bf16.gmra.mxu0 %v725
    %v761 = vpop.f32.mrf.mxu0
    %v762 = vadd.f32 0.0, %v761
    %v763 = vpop.f32.mrf.mxu0
    %v764 = vpop.f32.mrf.mxu0
    %v765 = vadd.f32 0.0, %v764
    %v766 = vpop.f32.mrf.mxu0
    %767 = vdwg.mxu0
    %v768 = vadd.f32 %v127, %v762
    %v769 = vadd.f32 %v130, %v765
    %v770 = vlaneseq
    %v771 = vshrl.u32 %v770, 7
    %v772 = vsub.s32 3, %v771
    %v773 = vrot.slane %v301, %v772
    %v774 = vadd.f32 %v768, %v773
    %v775 = vadd.f32 %v769, %v773
    %s776 = scalar_lea.vmem %s7, 32
    %v777 = vld [vmem:[%s776] sm:$0xff]
    %v778 = vld [vmem:[%s776 + $0x8] sm:$0xff]
    %v779 = vld [vmem:[%s776 + $0x10] sm:$0xff]
    %v780 = vld [vmem:[%s776 + $0x18] sm:$0xff]
    %s781 = scalar_lea.vmem [#allocation5], 4
    %v782 = vld [vmem:[%s781] sm:$0xf]
    %v783 = vpack.c.bf16 %v775, %v774
    %v788 = vunpack.c.l.b16 %v777
    %v789 = vunpack.c.l.b16 %v778
    %v790 = vunpack.c.l.b16 %v779
    %v791 = vunpack.c.l.b16 %v780
    %v792 = vpack.c.b16 %v789, %v788
    %v793 = vpack.c.b16 %v791, %v790
    %v797 = vsel %vm315, %v783, 0
    %799 = vmatprep.subr.bf16.mxu0 0
    %800 = vmatpush1.bf16.msra.mxu0 0
    %801 = vmatprep.subr.bf16.mxu0 0
    %802 = vmatpush1.bf16.msra.mxu0 0
    %803 = vmatprep.subr.bf16.mxu0 0
    %804 = vmatpush1.bf16.msra.mxu0 0
    %805 = vmatprep.subr.bf16.mxu0 0
    %806 = vmatpush1.bf16.msra.mxu0 0
    %807 = vmatprep.subr.bf16.mxu0 0
    %808 = vmatpush1.bf16.msra.mxu0 0
    %809 = vmatprep.subr.bf16.mxu0 0
    %810 = vmatpush1.bf16.msra.mxu0 0
    %811 = vmatprep.subr.bf16.mxu0 0
    %812 = vmatpush1.bf16.msra.mxu0 %v793
    %813 = vmatprep.subr.bf16.mxu0 0
    %814 = vmatpush1.bf16.msra.mxu0 %v792
    %815 = vmatprep.subr.bf16.mxu0 0
    %816 = vmatpush2.bf16.msra.mxu0 0
    %817 = vmatprep.subr.bf16.mxu0 0
    %818 = vmatpush2.bf16.msra.mxu0 0
    %819 = vmatprep.subr.bf16.mxu0 0
    %820 = vmatpush2.bf16.msra.mxu0 0
    %821 = vmatprep.subr.bf16.mxu0 0
    %822 = vmatpush2.bf16.msra.mxu0 0
    %823 = vmatprep.subr.bf16.mxu0 0
    %824 = vmatpush2.bf16.msra.mxu0 0
    %825 = vmatprep.subr.bf16.mxu0 0
    %826 = vmatpush2.bf16.msra.mxu0 0
    %827 = vmatprep.subr.bf16.mxu0 0
    %828 = vmatpush2.bf16.msra.mxu0 0
    %829 = vmatprep.subr.bf16.mxu0 0
    %830 = vmatpush2.bf16.msra.mxu0 0
    %831 = vmatprep.mubr.bf16.mxu0 0
    %832 = vmatmul.mubr.bf16.gmra.mxu0 %v797
    %v833 = vpop.f32.mrf.mxu0
    %v834 = vadd.f32 0.0, %v833
    %v835 = vpop.f32.mrf.mxu0
    %v836 = vpop.f32.mrf.mxu0
    %v837 = vadd.f32 0.0, %v836
    %v838 = vpop.f32.mrf.mxu0
    %839 = vdwg.mxu0
    %842 = vrot.lane.b32.xlu0 %v834, 96
    %v843 = vpop.permute.xlu0 %842
    %844 = vrot.lane.b32.xlu0 %v837, 96
    %v845 = vpop.permute.xlu0 %844
    %v848 = vpack.c.bf16 %v837, %v834
    %v849 = vpack.c.bf16 %v845, %v843
    %850 = vrot.lane.b32.xlu0 %v792, 32
    %v851 = vpop.permute.xlu0 %850
    %852 = vrot.lane.b32.xlu0 %v793, 32
    %v853 = vpop.permute.xlu0 %852
    %856 = vmatprep.subr.bf16.mxu0 0
    %857 = vmatpush1.bf16.msra.mxu0 0
    %858 = vmatprep.subr.bf16.mxu0 0
    %859 = vmatpush1.bf16.msra.mxu0 0
    %860 = vmatprep.subr.bf16.mxu0 0
    %861 = vmatpush1.bf16.msra.mxu0 0
    %862 = vmatprep.subr.bf16.mxu0 0
    %863 = vmatpush1.bf16.msra.mxu0 0
    %864 = vmatprep.subr.bf16.mxu0 0
    %865 = vmatpush1.bf16.msra.mxu0 0
    %866 = vmatprep.subr.bf16.mxu0 0
    %867 = vmatpush1.bf16.msra.mxu0 0
    %868 = vmatprep.subr.bf16.mxu0 0
    %869 = vmatpush1.bf16.msra.mxu0 %v853
    %870 = vmatprep.subr.bf16.mxu0 0
    %871 = vmatpush1.bf16.msra.mxu0 %v851
    %872 = vmatprep.subr.bf16.mxu0 0
    %873 = vmatpush2.bf16.msra.mxu0 0
    %874 = vmatprep.subr.bf16.mxu0 0
    %875 = vmatpush2.bf16.msra.mxu0 0
    %876 = vmatprep.subr.bf16.mxu0 0
    %877 = vmatpush2.bf16.msra.mxu0 0
    %878 = vmatprep.subr.bf16.mxu0 0
    %879 = vmatpush2.bf16.msra.mxu0 0
    %880 = vmatprep.subr.bf16.mxu0 0
    %881 = vmatpush2.bf16.msra.mxu0 0
    %882 = vmatprep.subr.bf16.mxu0 0
    %883 = vmatpush2.bf16.msra.mxu0 0
    %884 = vmatprep.subr.bf16.mxu0 0
    %885 = vmatpush2.bf16.msra.mxu0 0
    %886 = vmatprep.subr.bf16.mxu0 0
    %887 = vmatpush2.bf16.msra.mxu0 0
    %888 = vmatprep.mubr.bf16.mxu0 0
    %889 = vmatmul.mubr.bf16.gmra.mxu0 %v377
    %v890 = vpop.f32.mrf.mxu0
    %v891 = vadd.f32 0.0, %v890
    %v892 = vpop.f32.mrf.mxu0
    %v893 = vpop.f32.mrf.mxu0
    %v894 = vadd.f32 0.0, %v893
    %v895 = vpop.f32.mrf.mxu0
    %896 = vmatprep.mubr.bf16.mxu0 0
    %897 = vmatmul.mubr.bf16.gmra.mxu0 %v380
    %v898 = vpop.f32.mrf.mxu0
    %v899 = vadd.f32 0.0, %v898
    %v900 = vpop.f32.mrf.mxu0
    %v901 = vpop.f32.mrf.mxu0
    %v902 = vadd.f32 0.0, %v901
    %v903 = vpop.f32.mrf.mxu0
    %904 = vdwg.mxu0
    %905 = vmatprep.subr.bf16.mxu0 0
    %906 = vmatpush1.bf16.msra.mxu0 0
    %907 = vmatprep.subr.bf16.mxu0 0
    %908 = vmatpush1.bf16.msra.mxu0 0
    %909 = vmatprep.subr.bf16.mxu0 0
    %910 = vmatpush1.bf16.msra.mxu0 0
    %911 = vmatprep.subr.bf16.mxu0 0
    %912 = vmatpush1.bf16.msra.mxu0 0
    %913 = vmatprep.subr.bf16.mxu0 0
    %914 = vmatpush1.bf16.msra.mxu0 0
    %915 = vmatprep.subr.bf16.mxu0 0
    %916 = vmatpush1.bf16.msra.mxu0 0
    %917 = vmatprep.subr.bf16.mxu0 0
    %918 = vmatpush1.bf16.msra.mxu0 %v849
    %919 = vmatprep.subr.bf16.mxu0 0
    %920 = vmatpush1.bf16.msra.mxu0 %v848
    %921 = vmatprep.subr.bf16.mxu0 0
    %922 = vmatpush2.bf16.msra.mxu0 0
    %923 = vmatprep.subr.bf16.mxu0 0
    %924 = vmatpush2.bf16.msra.mxu0 0
    %925 = vmatprep.subr.bf16.mxu0 0
    %926 = vmatpush2.bf16.msra.mxu0 0
    %927 = vmatprep.subr.bf16.mxu0 0
    %928 = vmatpush2.bf16.msra.mxu0 0
    %929 = vmatprep.subr.bf16.mxu0 0
    %930 = vmatpush2.bf16.msra.mxu0 0
    %931 = vmatprep.subr.bf16.mxu0 0
    %932 = vmatpush2.bf16.msra.mxu0 0
    %933 = vmatprep.subr.bf16.mxu0 0
    %934 = vmatpush2.bf16.msra.mxu0 0
    %935 = vmatprep.subr.bf16.mxu0 0
    %936 = vmatpush2.bf16.msra.mxu0 0
    %937 = vmatprep.mubr.bf16.mxu0 0
    %938 = vmatmul.mubr.bf16.gmra.mxu0 %v442
    %v939 = vpop.f32.mrf.mxu0
    %v940 = vadd.f32 %v891, %v939
    %v941 = vpop.f32.mrf.mxu0
    %v942 = vpop.f32.mrf.mxu0
    %v943 = vadd.f32 %v894, %v942
    %v944 = vpop.f32.mrf.mxu0
    %945 = vmatprep.mubr.bf16.mxu0 0
    %946 = vmatmul.mubr.bf16.gmra.mxu0 %v445
    %v947 = vpop.f32.mrf.mxu0
    %v948 = vadd.f32 %v899, %v947
    %v949 = vpop.f32.mrf.mxu0
    %v950 = vpop.f32.mrf.mxu0
    %v951 = vadd.f32 %v902, %v950
    %v952 = vpop.f32.mrf.mxu0
    %953 = vdwg.mxu0
    %v954 = vlaneseq
    %v955 = vshrl.u32 %v954, 7
    %v956 = vsub.s32 0, %v955
    %v957 = vrot.slane %v782, %v956
    %v958 = vadd.f32 %v940, %v957
    %v959 = vadd.f32 %v943, %v957
    %v960 = vadd.f32 %v948, %v957
    %v961 = vadd.f32 %v951, %v957
    %v962 = vmax.f32 %v958, 0.0
    %v963 = vmax.f32 %v959, 0.0
    %v964 = vmax.f32 %v960, 0.0
    %v965 = vmax.f32 %v961, 0.0
    %v966 = vpack.c.bf16 %v963, %v962
    %v967 = vpack.c.bf16 %v965, %v964
    %v968 = vlaneseq
    %v969 = vshrl.u32 %v968, 7
    %v970 = vsub.s32 1, %v969
    %v971 = vrot.slane %v782, %v970
    %v972 = vunpack.c.h.b16 %v777
    %v973 = vunpack.c.h.b16 %v778
    %v974 = vunpack.c.h.b16 %v779
    %v975 = vunpack.c.h.b16 %v780
    %v976 = vpack.c.b16 %v973, %v972
    %v977 = vpack.c.b16 %v975, %v974
    %v981 = vsel %vm315, %v966, 0
    %v984 = vsel %vm315, %v967, 0
    %986 = vmatprep.subr.bf16.mxu0 0
    %987 = vmatpush1.bf16.msra.mxu0 0
    %988 = vmatprep.subr.bf16.mxu0 0
    %989 = vmatpush1.bf16.msra.mxu0 0
    %990 = vmatprep.subr.bf16.mxu0 0
    %991 = vmatpush1.bf16.msra.mxu0 0
    %992 = vmatprep.subr.bf16.mxu0 0
    %993 = vmatpush1.bf16.msra.mxu0 0
    %994 = vmatprep.subr.bf16.mxu0 0
    %995 = vmatpush1.bf16.msra.mxu0 0
    %996 = vmatprep.subr.bf16.mxu0 0
    %997 = vmatpush1.bf16.msra.mxu0 0
    %998 = vmatprep.subr.bf16.mxu0 0
    %999 = vmatpush1.bf16.msra.mxu0 %v977
    %1000 = vmatprep.subr.bf16.mxu0 0
    %1001 = vmatpush1.bf16.msra.mxu0 %v976
    %1002 = vmatprep.subr.bf16.mxu0 0
    %1003 = vmatpush2.bf16.msra.mxu0 0
    %1004 = vmatprep.subr.bf16.mxu0 0
    %1005 = vmatpush2.bf16.msra.mxu0 0
    %1006 = vmatprep.subr.bf16.mxu0 0
    %1007 = vmatpush2.bf16.msra.mxu0 0
    %1008 = vmatprep.subr.bf16.mxu0 0
    %1009 = vmatpush2.bf16.msra.mxu0 0
    %1010 = vmatprep.subr.bf16.mxu0 0
    %1011 = vmatpush2.bf16.msra.mxu0 0
    %1012 = vmatprep.subr.bf16.mxu0 0
    %1013 = vmatpush2.bf16.msra.mxu0 0
    %1014 = vmatprep.subr.bf16.mxu0 0
    %1015 = vmatpush2.bf16.msra.mxu0 0
    %1016 = vmatprep.subr.bf16.mxu0 0
    %1017 = vmatpush2.bf16.msra.mxu0 0
    %1018 = vmatprep.mubr.bf16.mxu0 0
    %1019 = vmatmul.mubr.bf16.gmra.mxu0 %v981
    %v1020 = vpop.f32.mrf.mxu0
    %v1021 = vadd.f32 %v971, %v1020
    %v1022 = vpop.f32.mrf.mxu0
    %v1023 = vpop.f32.mrf.mxu0
    %v1024 = vadd.f32 %v971, %v1023
    %v1025 = vpop.f32.mrf.mxu0
    %1026 = vmatprep.mubr.bf16.mxu0 0
    %1027 = vmatmul.mubr.bf16.gmra.mxu0 %v984
    %v1028 = vpop.f32.mrf.mxu0
    %v1029 = vadd.f32 %v971, %v1028
    %v1030 = vpop.f32.mrf.mxu0
    %v1031 = vpop.f32.mrf.mxu0
    %v1032 = vadd.f32 %v971, %v1031
    %v1033 = vpop.f32.mrf.mxu0
    %1034 = vdwg.mxu0
    %v1035 = vpack.c.bf16 %v1024, %v1021
    %v1036 = vpack.c.bf16 %v1032, %v1029
    %1037 = vmatprep.subr.bf16.mxu0 0
    %1038 = vmatpush1.bf16.msra.mxu0 0
    %1039 = vmatprep.subr.bf16.mxu0 0
    %1040 = vmatpush1.bf16.msra.mxu0 0
    %1041 = vmatprep.subr.bf16.mxu0 0
    %1042 = vmatpush1.bf16.msra.mxu0 0
    %1043 = vmatprep.subr.bf16.mxu0 0
    %1044 = vmatpush1.bf16.msra.mxu0 0
    %1045 = vmatprep.subr.bf16.mxu0 0
    %1046 = vmatpush1.bf16.msra.mxu0 0
    %1047 = vmatprep.subr.bf16.mxu0 0
    %1048 = vmatpush1.bf16.msra.mxu0 0
    %1049 = vmatprep.subr.bf16.mxu0 0
    %1050 = vmatpush1.bf16.msra.mxu0 %v1036
    %1051 = vmatprep.subr.bf16.mxu0 0
    %1052 = vmatpush1.bf16.msra.mxu0 %v1035
    %1053 = vmatprep.subr.bf16.mxu0 0
    %1054 = vmatpush2.bf16.msra.mxu0 0
    %1055 = vmatprep.subr.bf16.mxu0 0
    %1056 = vmatpush2.bf16.msra.mxu0 0
    %1057 = vmatprep.subr.bf16.mxu0 0
    %1058 = vmatpush2.bf16.msra.mxu0 0
    %1059 = vmatprep.subr.bf16.mxu0 0
    %1060 = vmatpush2.bf16.msra.mxu0 0
    %1061 = vmatprep.subr.bf16.mxu0 0
    %1062 = vmatpush2.bf16.msra.mxu0 0
    %1063 = vmatprep.subr.bf16.mxu0 0
    %1064 = vmatpush2.bf16.msra.mxu0 0
    %1065 = vmatprep.subr.bf16.mxu0 0
    %1066 = vmatpush2.bf16.msra.mxu0 0
    %1067 = vmatprep.subr.bf16.mxu0 0
    %1068 = vmatpush2.bf16.msra.mxu0 0
    %1069 = vmatprep.mubr.bf16.mxu0 0
    %1070 = vmatmul.mubr.bf16.gmra.mxu0 %v598
    %v1071 = vpop.f32.mrf.mxu0
    %v1072 = vadd.f32 0.0, %v1071
    %v1073 = vpop.f32.mrf.mxu0
    %v1074 = vpop.f32.mrf.mxu0
    %v1075 = vadd.f32 0.0, %v1074
    %v1076 = vpop.f32.mrf.mxu0
    %1077 = vdwg.mxu0
    %v1078 = vpack.c.bf16 %v1075, %v1072
    %1079 = vrot.lane.b32.xlu0 %v976, 96
    %v1080 = vpop.permute.xlu0 %1079
    %1081 = vrot.lane.b32.xlu0 %v977, 96
    %v1082 = vpop.permute.xlu0 %1081
    %v1086 = vsel %vm315, %v1078, 0
    %1088 = vmatprep.subr.bf16.mxu0 0
    %1089 = vmatpush1.bf16.msra.mxu0 0
    %1090 = vmatprep.subr.bf16.mxu0 0
    %1091 = vmatpush1.bf16.msra.mxu0 0
    %1092 = vmatprep.subr.bf16.mxu0 0
    %1093 = vmatpush1.bf16.msra.mxu0 0
    %1094 = vmatprep.subr.bf16.mxu0 0
    %1095 = vmatpush1.bf16.msra.mxu0 0
    %1096 = vmatprep.subr.bf16.mxu0 0
    %1097 = vmatpush1.bf16.msra.mxu0 0
    %1098 = vmatprep.subr.bf16.mxu0 0
    %1099 = vmatpush1.bf16.msra.mxu0 0
    %1100 = vmatprep.subr.bf16.mxu0 0
    %1101 = vmatpush1.bf16.msra.mxu0 %v1082
    %1102 = vmatprep.subr.bf16.mxu0 0
    %1103 = vmatpush1.bf16.msra.mxu0 %v1080
    %1104 = vmatprep.subr.bf16.mxu0 0
    %1105 = vmatpush2.bf16.msra.mxu0 0
    %1106 = vmatprep.subr.bf16.mxu0 0
    %1107 = vmatpush2.bf16.msra.mxu0 0
    %1108 = vmatprep.subr.bf16.mxu0 0
    %1109 = vmatpush2.bf16.msra.mxu0 0
    %1110 = vmatprep.subr.bf16.mxu0 0
    %1111 = vmatpush2.bf16.msra.mxu0 0
    %1112 = vmatprep.subr.bf16.mxu0 0
    %1113 = vmatpush2.bf16.msra.mxu0 0
    %1114 = vmatprep.subr.bf16.mxu0 0
    %1115 = vmatpush2.bf16.msra.mxu0 0
    %1116 = vmatprep.subr.bf16.mxu0 0
    %1117 = vmatpush2.bf16.msra.mxu0 0
    %1118 = vmatprep.subr.bf16.mxu0 0
    %1119 = vmatpush2.bf16.msra.mxu0 0
    %1120 = vmatprep.mubr.bf16.mxu0 0
    %1121 = vmatmul.mubr.bf16.gmra.mxu0 %v1086
    %v1122 = vpop.f32.mrf.mxu0
    %v1123 = vadd.f32 0.0, %v1122
    %v1124 = vpop.f32.mrf.mxu0
    %v1125 = vpop.f32.mrf.mxu0
    %v1126 = vadd.f32 0.0, %v1125
    %v1127 = vpop.f32.mrf.mxu0
    %1128 = vdwg.mxu0
    %1131 = vrot.lane.b32.xlu0 %v1123, 64
    %v1132 = vpop.permute.xlu0 %1131
    %1133 = vrot.lane.b32.xlu0 %v1126, 64
    %v1134 = vpop.permute.xlu0 %1133
    %v1137 = vadd.f32 %v834, %v1132
    %v1138 = vadd.f32 %v837, %v1134
    %v1139 = vlaneseq
    %v1140 = vshrl.u32 %v1139, 7
    %v1141 = vsub.s32 2, %v1140
    %v1142 = vrot.slane %v782, %v1141
    %1144 = vrot.lane.b32.xlu0 %v1142, 64
    %v1145 = vpop.permute.xlu0 %1144
    %v1147 = vadd.f32 %v1137, %v1145
    %v1148 = vadd.f32 %v1138, %v1145
    %v1149 = vmax.f32 %v1147, 0.0
    %v1150 = vmax.f32 %v1148, 0.0
    %v1151 = vpack.c.bf16 %v1150, %v1149
    %1153 = vrot.lane.b32.xlu0 %v1151, 64
    %v1154 = vpop.permute.xlu0 %1153
    %1155 = vrot.lane.b32.xlu0 %v976, 64
    %v1156 = vpop.permute.xlu0 %1155
    %1157 = vrot.lane.b32.xlu0 %v977, 64
    %v1158 = vpop.permute.xlu0 %1157
    %v1162 = vsel %vm315, %v1154, 0
    %1164 = vmatprep.subr.bf16.mxu0 0
    %1165 = vmatpush1.bf16.msra.mxu0 0
    %1166 = vmatprep.subr.bf16.mxu0 0
    %1167 = vmatpush1.bf16.msra.mxu0 0
    %1168 = vmatprep.subr.bf16.mxu0 0
    %1169 = vmatpush1.bf16.msra.mxu0 0
    %1170 = vmatprep.subr.bf16.mxu0 0
    %1171 = vmatpush1.bf16.msra.mxu0 0
    %1172 = vmatprep.subr.bf16.mxu0 0
    %1173 = vmatpush1.bf16.msra.mxu0 0
    %1174 = vmatprep.subr.bf16.mxu0 0
    %1175 = vmatpush1.bf16.msra.mxu0 0
    %1176 = vmatprep.subr.bf16.mxu0 0
    %1177 = vmatpush1.bf16.msra.mxu0 %v1158
    %1178 = vmatprep.subr.bf16.mxu0 0
    %1179 = vmatpush1.bf16.msra.mxu0 %v1156
    %1180 = vmatprep.subr.bf16.mxu0 0
    %1181 = vmatpush2.bf16.msra.mxu0 0
    %1182 = vmatprep.subr.bf16.mxu0 0
    %1183 = vmatpush2.bf16.msra.mxu0 0
    %1184 = vmatprep.subr.bf16.mxu0 0
    %1185 = vmatpush2.bf16.msra.mxu0 0
    %1186 = vmatprep.subr.bf16.mxu0 0
    %1187 = vmatpush2.bf16.msra.mxu0 0
    %1188 = vmatprep.subr.bf16.mxu0 0
    %1189 = vmatpush2.bf16.msra.mxu0 0
    %1190 = vmatprep.subr.bf16.mxu0 0
    %1191 = vmatpush2.bf16.msra.mxu0 0
    %1192 = vmatprep.subr.bf16.mxu0 0
    %1193 = vmatpush2.bf16.msra.mxu0 0
    %1194 = vmatprep.subr.bf16.mxu0 0
    %1195 = vmatpush2.bf16.msra.mxu0 0
    %1196 = vmatprep.mubr.bf16.mxu0 0
    %1197 = vmatmul.mubr.bf16.gmra.mxu0 %v1162
    %v1198 = vpop.f32.mrf.mxu0
    %v1199 = vadd.f32 0.0, %v1198
    %v1200 = vpop.f32.mrf.mxu0
    %v1201 = vpop.f32.mrf.mxu0
    %v1202 = vadd.f32 0.0, %v1201
    %v1203 = vpop.f32.mrf.mxu0
    %1204 = vdwg.mxu0
    %v1205 = vadd.f32 %v774, %v1199
    %v1206 = vadd.f32 %v775, %v1202
    %v1207 = vlaneseq
    %v1208 = vshrl.u32 %v1207, 7
    %v1209 = vsub.s32 3, %v1208
    %v1210 = vrot.slane %v782, %v1209
    %v1211 = vadd.f32 %v1205, %v1210
    %v1212 = vadd.f32 %v1206, %v1210
    %s1213 = scalar_lea.vmem %s7, 64
    %v1214 = vld [vmem:[%s1213] sm:$0xff]
    %v1215 = vld [vmem:[%s1213 + $0x8] sm:$0xff]
    %v1216 = vld [vmem:[%s1213 + $0x10] sm:$0xff]
    %v1217 = vld [vmem:[%s1213 + $0x18] sm:$0xff]
    %s1218 = scalar_lea.vmem [#allocation5], 8
    %v1219 = vld [vmem:[%s1218] sm:$0xf]
    %v1220 = vpack.c.bf16 %v1212, %v1211
    %v1225 = vunpack.c.l.b16 %v1214
    %v1226 = vunpack.c.l.b16 %v1215
    %v1227 = vunpack.c.l.b16 %v1216
    %v1228 = vunpack.c.l.b16 %v1217
    %v1229 = vpack.c.b16 %v1226, %v1225
    %v1230 = vpack.c.b16 %v1228, %v1227
    %v1234 = vsel %vm315, %v1220, 0
    %1236 = vmatprep.subr.bf16.mxu0 0
    %1237 = vmatpush1.bf16.msra.mxu0 0
    %1238 = vmatprep.subr.bf16.mxu0 0
    %1239 = vmatpush1.bf16.msra.mxu0 0
    %1240 = vmatprep.subr.bf16.mxu0 0
    %1241 = vmatpush1.bf16.msra.mxu0 0
    %1242 = vmatprep.subr.bf16.mxu0 0
    %1243 = vmatpush1.bf16.msra.mxu0 0
    %1244 = vmatprep.subr.bf16.mxu0 0
    %1245 = vmatpush1.bf16.msra.mxu0 0
    %1246 = vmatprep.subr.bf16.mxu0 0
    %1247 = vmatpush1.bf16.msra.mxu0 0
    %1248 = vmatprep.subr.bf16.mxu0 0
    %1249 = vmatpush1.bf16.msra.mxu0 %v1230
    %1250 = vmatprep.subr.bf16.mxu0 0
    %1251 = vmatpush1.bf16.msra.mxu0 %v1229
    %1252 = vmatprep.subr.bf16.mxu0 0
    %1253 = vmatpush2.bf16.msra.mxu0 0
    %1254 = vmatprep.subr.bf16.mxu0 0
    %1255 = vmatpush2.bf16.msra.mxu0 0
    %1256 = vmatprep.subr.bf16.mxu0 0
    %1257 = vmatpush2.bf16.msra.mxu0 0
    %1258 = vmatprep.subr.bf16.mxu0 0
    %1259 = vmatpush2.bf16.msra.mxu0 0
    %1260 = vmatprep.subr.bf16.mxu0 0
    %1261 = vmatpush2.bf16.msra.mxu0 0
    %1262 = vmatprep.subr.bf16.mxu0 0
    %1263 = vmatpush2.bf16.msra.mxu0 0
    %1264 = vmatprep.subr.bf16.mxu0 0
    %1265 = vmatpush2.bf16.msra.mxu0 0
    %1266 = vmatprep.subr.bf16.mxu0 0
    %1267 = vmatpush2.bf16.msra.mxu0 0
    %1268 = vmatprep.mubr.bf16.mxu0 0
    %1269 = vmatmul.mubr.bf16.gmra.mxu0 %v1234
    %v1270 = vpop.f32.mrf.mxu0
    %v1271 = vadd.f32 0.0, %v1270
    %v1272 = vpop.f32.mrf.mxu0
    %v1273 = vpop.f32.mrf.mxu0
    %v1274 = vadd.f32 0.0, %v1273
    %v1275 = vpop.f32.mrf.mxu0
    %1276 = vdwg.mxu0
    %1279 = vrot.lane.b32.xlu0 %v1271, 96
    %v1280 = vpop.permute.xlu0 %1279
    %1281 = vrot.lane.b32.xlu0 %v1274, 96
    %v1282 = vpop.permute.xlu0 %1281
    %v1285 = vpack.c.bf16 %v1274, %v1271
    %v1286 = vpack.c.bf16 %v1282, %v1280
    %1287 = vrot.lane.b32.xlu0 %v1229, 32
    %v1288 = vpop.permute.xlu0 %1287
    %1289 = vrot.lane.b32.xlu0 %v1230, 32
    %v1290 = vpop.permute.xlu0 %1289
    %1293 = vmatprep.subr.bf16.mxu0 0
    %1294 = vmatpush1.bf16.msra.mxu0 0
    %1295 = vmatprep.subr.bf16.mxu0 0
    %1296 = vmatpush1.bf16.msra.mxu0 0
    %1297 = vmatprep.subr.bf16.mxu0 0
    %1298 = vmatpush1.bf16.msra.mxu0 0
    %1299 = vmatprep.subr.bf16.mxu0 0
    %1300 = vmatpush1.bf16.msra.mxu0 0
    %1301 = vmatprep.subr.bf16.mxu0 0
    %1302 = vmatpush1.bf16.msra.mxu0 0
    %1303 = vmatprep.subr.bf16.mxu0 0
    %1304 = vmatpush1.bf16.msra.mxu0 0
    %1305 = vmatprep.subr.bf16.mxu0 0
    %1306 = vmatpush1.bf16.msra.mxu0 %v1290
    %1307 = vmatprep.subr.bf16.mxu0 0
    %1308 = vmatpush1.bf16.msra.mxu0 %v1288
    %1309 = vmatprep.subr.bf16.mxu0 0
    %1310 = vmatpush2.bf16.msra.mxu0 0
    %1311 = vmatprep.subr.bf16.mxu0 0
    %1312 = vmatpush2.bf16.msra.mxu0 0
    %1313 = vmatprep.subr.bf16.mxu0 0
    %1314 = vmatpush2.bf16.msra.mxu0 0
    %1315 = vmatprep.subr.bf16.mxu0 0
    %1316 = vmatpush2.bf16.msra.mxu0 0
    %1317 = vmatprep.subr.bf16.mxu0 0
    %1318 = vmatpush2.bf16.msra.mxu0 0
    %1319 = vmatprep.subr.bf16.mxu0 0
    %1320 = vmatpush2.bf16.msra.mxu0 0
    %1321 = vmatprep.subr.bf16.mxu0 0
    %1322 = vmatpush2.bf16.msra.mxu0 0
    %1323 = vmatprep.subr.bf16.mxu0 0
    %1324 = vmatpush2.bf16.msra.mxu0 0
    %1325 = vmatprep.mubr.bf16.mxu0 0
    %1326 = vmatmul.mubr.bf16.gmra.mxu0 %v377
    %v1327 = vpop.f32.mrf.mxu0
    %v1328 = vadd.f32 0.0, %v1327
    %v1329 = vpop.f32.mrf.mxu0
    %v1330 = vpop.f32.mrf.mxu0
    %v1331 = vadd.f32 0.0, %v1330
    %v1332 = vpop.f32.mrf.mxu0
    %1333 = vmatprep.mubr.bf16.mxu0 0
    %1334 = vmatmul.mubr.bf16.gmra.mxu0 %v380
    %v1335 = vpop.f32.mrf.mxu0
    %v1336 = vadd.f32 0.0, %v1335
    %v1337 = vpop.f32.mrf.mxu0
    %v1338 = vpop.f32.mrf.mxu0
    %v1339 = vadd.f32 0.0, %v1338
    %v1340 = vpop.f32.mrf.mxu0
    %1341 = vdwg.mxu0
    %1342 = vmatprep.subr.bf16.mxu0 0
    %1343 = vmatpush1.bf16.msra.mxu0 0
    %1344 = vmatprep.subr.bf16.mxu0 0
    %1345 = vmatpush1.bf16.msra.mxu0 0
    %1346 = vmatprep.subr.bf16.mxu0 0
    %1347 = vmatpush1.bf16.msra.mxu0 0
    %1348 = vmatprep.subr.bf16.mxu0 0
    %1349 = vmatpush1.bf16.msra.mxu0 0
    %1350 = vmatprep.subr.bf16.mxu0 0
    %1351 = vmatpush1.bf16.msra.mxu0 0
    %1352 = vmatprep.subr.bf16.mxu0 0
    %1353 = vmatpush1.bf16.msra.mxu0 0
    %1354 = vmatprep.subr.bf16.mxu0 0
    %1355 = vmatpush1.bf16.msra.mxu0 %v1286
    %1356 = vmatprep.subr.bf16.mxu0 0
    %1357 = vmatpush1.bf16.msra.mxu0 %v1285
    %1358 = vmatprep.subr.bf16.mxu0 0
    %1359 = vmatpush2.bf16.msra.mxu0 0
    %1360 = vmatprep.subr.bf16.mxu0 0
    %1361 = vmatpush2.bf16.msra.mxu0 0
    %1362 = vmatprep.subr.bf16.mxu0 0
    %1363 = vmatpush2.bf16.msra.mxu0 0
    %1364 = vmatprep.subr.bf16.mxu0 0
    %1365 = vmatpush2.bf16.msra.mxu0 0
    %1366 = vmatprep.subr.bf16.mxu0 0
    %1367 = vmatpush2.bf16.msra.mxu0 0
    %1368 = vmatprep.subr.bf16.mxu0 0
    %1369 = vmatpush2.bf16.msra.mxu0 0
    %1370 = vmatprep.subr.bf16.mxu0 0
    %1371 = vmatpush2.bf16.msra.mxu0 0
    %1372 = vmatprep.subr.bf16.mxu0 0
    %1373 = vmatpush2.bf16.msra.mxu0 0
    %1374 = vmatprep.mubr.bf16.mxu0 0
    %1375 = vmatmul.mubr.bf16.gmra.mxu0 %v442
    %v1376 = vpop.f32.mrf.mxu0
    %v1377 = vadd.f32 %v1328, %v1376
    %v1378 = vpop.f32.mrf.mxu0
    %v1379 = vpop.f32.mrf.mxu0
    %v1380 = vadd.f32 %v1331, %v1379
    %v1381 = vpop.f32.mrf.mxu0
    %1382 = vmatprep.mubr.bf16.mxu0 0
    %1383 = vmatmul.mubr.bf16.gmra.mxu0 %v445
    %v1384 = vpop.f32.mrf.mxu0
    %v1385 = vadd.f32 %v1336, %v1384
    %v1386 = vpop.f32.mrf.mxu0
    %v1387 = vpop.f32.mrf.mxu0
    %v1388 = vadd.f32 %v1339, %v1387
    %v1389 = vpop.f32.mrf.mxu0
    %1390 = vdwg.mxu0
    %v1391 = vlaneseq
    %v1392 = vshrl.u32 %v1391, 7
    %v1393 = vsub.s32 0, %v1392
    %v1394 = vrot.slane %v1219, %v1393
    %v1395 = vadd.f32 %v1377, %v1394
    %v1396 = vadd.f32 %v1380, %v1394
    %v1397 = vadd.f32 %v1385, %v1394
    %v1398 = vadd.f32 %v1388, %v1394
    %v1399 = vmax.f32 %v1395, 0.0
    %v1400 = vmax.f32 %v1396, 0.0
    %v1401 = vmax.f32 %v1397, 0.0
    %v1402 = vmax.f32 %v1398, 0.0
    %v1403 = vpack.c.bf16 %v1400, %v1399
    %v1404 = vpack.c.bf16 %v1402, %v1401
    %v1405 = vlaneseq
    %v1406 = vshrl.u32 %v1405, 7
    %v1407 = vsub.s32 1, %v1406
    %v1408 = vrot.slane %v1219, %v1407
    %v1409 = vunpack.c.h.b16 %v1214
    %v1410 = vunpack.c.h.b16 %v1215
    %v1411 = vunpack.c.h.b16 %v1216
    %v1412 = vunpack.c.h.b16 %v1217
    %v1413 = vpack.c.b16 %v1410, %v1409
    %v1414 = vpack.c.b16 %v1412, %v1411
    %v1418 = vsel %vm315, %v1403, 0
    %v1421 = vsel %vm315, %v1404, 0
    %1423 = vmatprep.subr.bf16.mxu0 0
    %1424 = vmatpush1.bf16.msra.mxu0 0
    %1425 = vmatprep.subr.bf16.mxu0 0
    %1426 = vmatpush1.bf16.msra.mxu0 0
    %1427 = vmatprep.subr.bf16.mxu0 0
    %1428 = vmatpush1.bf16.msra.mxu0 0
    %1429 = vmatprep.subr.bf16.mxu0 0
    %1430 = vmatpush1.bf16.msra.mxu0 0
    %1431 = vmatprep.subr.bf16.mxu0 0
    %1432 = vmatpush1.bf16.msra.mxu0 0
    %1433 = vmatprep.subr.bf16.mxu0 0
    %1434 = vmatpush1.bf16.msra.mxu0 0
    %1435 = vmatprep.subr.bf16.mxu0 0
    %1436 = vmatpush1.bf16.msra.mxu0 %v1414
    %1437 = vmatprep.subr.bf16.mxu0 0
    %1438 = vmatpush1.bf16.msra.mxu0 %v1413
    %1439 = vmatprep.subr.bf16.mxu0 0
    %1440 = vmatpush2.bf16.msra.mxu0 0
    %1441 = vmatprep.subr.bf16.mxu0 0
    %1442 = vmatpush2.bf16.msra.mxu0 0
    %1443 = vmatprep.subr.bf16.mxu0 0
    %1444 = vmatpush2.bf16.msra.mxu0 0
    %1445 = vmatprep.subr.bf16.mxu0 0
    %1446 = vmatpush2.bf16.msra.mxu0 0
    %1447 = vmatprep.subr.bf16.mxu0 0
    %1448 = vmatpush2.bf16.msra.mxu0 0
    %1449 = vmatprep.subr.bf16.mxu0 0
    %1450 = vmatpush2.bf16.msra.mxu0 0
    %1451 = vmatprep.subr.bf16.mxu0 0
    %1452 = vmatpush2.bf16.msra.mxu0 0
    %1453 = vmatprep.subr.bf16.mxu0 0
    %1454 = vmatpush2.bf16.msra.mxu0 0
    %1455 = vmatprep.mubr.bf16.mxu0 0
    %1456 = vmatmul.mubr.bf16.gmra.mxu0 %v1418
    %v1457 = vpop.f32.mrf.mxu0
    %v1458 = vadd.f32 %v1408, %v1457
    %v1459 = vpop.f32.mrf.mxu0
    %v1460 = vpop.f32.mrf.mxu0
    %v1461 = vadd.f32 %v1408, %v1460
    %v1462 = vpop.f32.mrf.mxu0
    %1463 = vmatprep.mubr.bf16.mxu0 0
    %1464 = vmatmul.mubr.bf16.gmra.mxu0 %v1421
    %v1465 = vpop.f32.mrf.mxu0
    %v1466 = vadd.f32 %v1408, %v1465
    %v1467 = vpop.f32.mrf.mxu0
    %v1468 = vpop.f32.mrf.mxu0
    %v1469 = vadd.f32 %v1408, %v1468
    %v1470 = vpop.f32.mrf.mxu0
    %1471 = vdwg.mxu0
    %v1472 = vpack.c.bf16 %v1461, %v1458
    %v1473 = vpack.c.bf16 %v1469, %v1466
    %1474 = vmatprep.subr.bf16.mxu0 0
    %1475 = vmatpush1.bf16.msra.mxu0 0
    %1476 = vmatprep.subr.bf16.mxu0 0
    %1477 = vmatpush1.bf16.msra.mxu0 0
    %1478 = vmatprep.subr.bf16.mxu0 0
    %1479 = vmatpush1.bf16.msra.mxu0 0
    %1480 = vmatprep.subr.bf16.mxu0 0
    %1481 = vmatpush1.bf16.msra.mxu0 0
    %1482 = vmatprep.subr.bf16.mxu0 0
    %1483 = vmatpush1.bf16.msra.mxu0 0
    %1484 = vmatprep.subr.bf16.mxu0 0
    %1485 = vmatpush1.bf16.msra.mxu0 0
    %1486 = vmatprep.subr.bf16.mxu0 0
    %1487 = vmatpush1.bf16.msra.mxu0 %v1473
    %1488 = vmatprep.subr.bf16.mxu0 0
    %1489 = vmatpush1.bf16.msra.mxu0 %v1472
    %1490 = vmatprep.subr.bf16.mxu0 0
    %1491 = vmatpush2.bf16.msra.mxu0 0
    %1492 = vmatprep.subr.bf16.mxu0 0
    %1493 = vmatpush2.bf16.msra.mxu0 0
    %1494 = vmatprep.subr.bf16.mxu0 0
    %1495 = vmatpush2.bf16.msra.mxu0 0
    %1496 = vmatprep.subr.bf16.mxu0 0
    %1497 = vmatpush2.bf16.msra.mxu0 0
    %1498 = vmatprep.subr.bf16.mxu0 0
    %1499 = vmatpush2.bf16.msra.mxu0 0
    %1500 = vmatprep.subr.bf16.mxu0 0
    %1501 = vmatpush2.bf16.msra.mxu0 0
    %1502 = vmatprep.subr.bf16.mxu0 0
    %1503 = vmatpush2.bf16.msra.mxu0 0
    %1504 = vmatprep.subr.bf16.mxu0 0
    %1505 = vmatpush2.bf16.msra.mxu0 0
    %1506 = vmatprep.mubr.bf16.mxu0 0
    %1507 = vmatmul.mubr.bf16.gmra.mxu0 %v598
    %v1508 = vpop.f32.mrf.mxu0
    %v1509 = vadd.f32 0.0, %v1508
    %v1510 = vpop.f32.mrf.mxu0
    %v1511 = vpop.f32.mrf.mxu0
    %v1512 = vadd.f32 0.0, %v1511
    %v1513 = vpop.f32.mrf.mxu0
    %1514 = vdwg.mxu0
    %v1515 = vpack.c.bf16 %v1512, %v1509
    %1516 = vrot.lane.b32.xlu0 %v1413, 96
    %v1517 = vpop.permute.xlu0 %1516
    %1518 = vrot.lane.b32.xlu0 %v1414, 96
    %v1519 = vpop.permute.xlu0 %1518
    %v1523 = vsel %vm315, %v1515, 0
    %1525 = vmatprep.subr.bf16.mxu0 0
    %1526 = vmatpush1.bf16.msra.mxu0 0
    %1527 = vmatprep.subr.bf16.mxu0 0
    %1528 = vmatpush1.bf16.msra.mxu0 0
    %1529 = vmatprep.subr.bf16.mxu0 0
    %1530 = vmatpush1.bf16.msra.mxu0 0
    %1531 = vmatprep.subr.bf16.mxu0 0
    %1532 = vmatpush1.bf16.msra.mxu0 0
    %1533 = vmatprep.subr.bf16.mxu0 0
    %1534 = vmatpush1.bf16.msra.mxu0 0
    %1535 = vmatprep.subr.bf16.mxu0 0
    %1536 = vmatpush1.bf16.msra.mxu0 0
    %1537 = vmatprep.subr.bf16.mxu0 0
    %1538 = vmatpush1.bf16.msra.mxu0 %v1519
    %1539 = vmatprep.subr.bf16.mxu0 0
    %1540 = vmatpush1.bf16.msra.mxu0 %v1517
    %1541 = vmatprep.subr.bf16.mxu0 0
    %1542 = vmatpush2.bf16.msra.mxu0 0
    %1543 = vmatprep.subr.bf16.mxu0 0
    %1544 = vmatpush2.bf16.msra.mxu0 0
    %1545 = vmatprep.subr.bf16.mxu0 0
    %1546 = vmatpush2.bf16.msra.mxu0 0
    %1547 = vmatprep.subr.bf16.mxu0 0
    %1548 = vmatpush2.bf16.msra.mxu0 0
    %1549 = vmatprep.subr.bf16.mxu0 0
    %1550 = vmatpush2.bf16.msra.mxu0 0
    %1551 = vmatprep.subr.bf16.mxu0 0
    %1552 = vmatpush2.bf16.msra.mxu0 0
    %1553 = vmatprep.subr.bf16.mxu0 0
    %1554 = vmatpush2.bf16.msra.mxu0 0
    %1555 = vmatprep.subr.bf16.mxu0 0
    %1556 = vmatpush2.bf16.msra.mxu0 0
    %1557 = vmatprep.mubr.bf16.mxu0 0
    %1558 = vmatmul.mubr.bf16.gmra.mxu0 %v1523
    %v1559 = vpop.f32.mrf.mxu0
    %v1560 = vadd.f32 0.0, %v1559
    %v1561 = vpop.f32.mrf.mxu0
    %v1562 = vpop.f32.mrf.mxu0
    %v1563 = vadd.f32 0.0, %v1562
    %v1564 = vpop.f32.mrf.mxu0
    %1565 = vdwg.mxu0
    %1568 = vrot.lane.b32.xlu0 %v1560, 64
    %v1569 = vpop.permute.xlu0 %1568
    %1570 = vrot.lane.b32.xlu0 %v1563, 64
    %v1571 = vpop.permute.xlu0 %1570
    %v1574 = vadd.f32 %v1271, %v1569
    %v1575 = vadd.f32 %v1274, %v1571
    %v1576 = vlaneseq
    %v1577 = vshrl.u32 %v1576, 7
    %v1578 = vsub.s32 2, %v1577
    %v1579 = vrot.slane %v1219, %v1578
    %1581 = vrot.lane.b32.xlu0 %v1579, 64
    %v1582 = vpop.permute.xlu0 %1581
    %v1584 = vadd.f32 %v1574, %v1582
    %v1585 = vadd.f32 %v1575, %v1582
    %v1586 = vmax.f32 %v1584, 0.0
    %v1587 = vmax.f32 %v1585, 0.0
    %v1588 = vpack.c.bf16 %v1587, %v1586
    %1590 = vrot.lane.b32.xlu0 %v1588, 64
    %v1591 = vpop.permute.xlu0 %1590
    %1592 = vrot.lane.b32.xlu0 %v1413, 64
    %v1593 = vpop.permute.xlu0 %1592
    %1594 = vrot.lane.b32.xlu0 %v1414, 64
    %v1595 = vpop.permute.xlu0 %1594
    %v1599 = vsel %vm315, %v1591, 0
    %1601 = vmatprep.subr.bf16.mxu0 0
    %1602 = vmatpush1.bf16.msra.mxu0 0
    %1603 = vmatprep.subr.bf16.mxu0 0
    %1604 = vmatpush1.bf16.msra.mxu0 0
    %1605 = vmatprep.subr.bf16.mxu0 0
    %1606 = vmatpush1.bf16.msra.mxu0 0
    %1607 = vmatprep.subr.bf16.mxu0 0
    %1608 = vmatpush1.bf16.msra.mxu0 0
    %1609 = vmatprep.subr.bf16.mxu0 0
    %1610 = vmatpush1.bf16.msra.mxu0 0
    %1611 = vmatprep.subr.bf16.mxu0 0
    %1612 = vmatpush1.bf16.msra.mxu0 0
    %1613 = vmatprep.subr.bf16.mxu0 0
    %1614 = vmatpush1.bf16.msra.mxu0 %v1595
    %1615 = vmatprep.subr.bf16.mxu0 0
    %1616 = vmatpush1.bf16.msra.mxu0 %v1593
    %1617 = vmatprep.subr.bf16.mxu0 0
    %1618 = vmatpush2.bf16.msra.mxu0 0
    %1619 = vmatprep.subr.bf16.mxu0 0
    %1620 = vmatpush2.bf16.msra.mxu0 0
    %1621 = vmatprep.subr.bf16.mxu0 0
    %1622 = vmatpush2.bf16.msra.mxu0 0
    %1623 = vmatprep.subr.bf16.mxu0 0
    %1624 = vmatpush2.bf16.msra.mxu0 0
    %1625 = vmatprep.subr.bf16.mxu0 0
    %1626 = vmatpush2.bf16.msra.mxu0 0
    %1627 = vmatprep.subr.bf16.mxu0 0
    %1628 = vmatpush2.bf16.msra.mxu0 0
    %1629 = vmatprep.subr.bf16.mxu0 0
    %1630 = vmatpush2.bf16.msra.mxu0 0
    %1631 = vmatprep.subr.bf16.mxu0 0
    %1632 = vmatpush2.bf16.msra.mxu0 0
    %1633 = vmatprep.mubr.bf16.mxu0 0
    %1634 = vmatmul.mubr.bf16.gmra.mxu0 %v1599
    %v1635 = vpop.f32.mrf.mxu0
    %v1636 = vadd.f32 0.0, %v1635
    %v1637 = vpop.f32.mrf.mxu0
    %v1638 = vpop.f32.mrf.mxu0
    %v1639 = vadd.f32 0.0, %v1638
    %v1640 = vpop.f32.mrf.mxu0
    %1641 = vdwg.mxu0
    %v1642 = vadd.f32 %v1211, %v1636
    %v1643 = vadd.f32 %v1212, %v1639
    %v1644 = vlaneseq
    %v1645 = vshrl.u32 %v1644, 7
    %v1646 = vsub.s32 3, %v1645
    %v1647 = vrot.slane %v1219, %v1646
    %v1648 = vadd.f32 %v1642, %v1647
    %v1649 = vadd.f32 %v1643, %v1647
    %v1650 = vld [vmem:[%s9] sm:$0xf]
    %v1651 = vld [vmem:[%s9 + $0x4] sm:$0xf]
    %v1652 = vld [vmem:[%s9 + $0x8] sm:$0xf]
    %v1653 = vld [vmem:[%s9 + $0xc] sm:$0xf]
    %v1654 = vld [vmem:[%s9 + $0x10] sm:$0xf]
    %v1655 = vld [vmem:[%s9 + $0x14] sm:$0xf]
    %v1656 = vld [vmem:[%s9 + $0x18] sm:$0xf]
    %v1657 = vld [vmem:[%s9 + $0x1c] sm:$0xf]
    %v1658 = vld [vmem:[%s10] sm:$0xff]
    %v1659 = vld [vmem:[%s10 + $0x8] sm:$0xff]
    %v1660 = vld [vmem:[%s10 + $0x10] sm:$0xff]
    %v1661 = vld [vmem:[%s10 + $0x18] sm:$0xff]
    %v1662 = vpack.c.bf16 %v1649, %v1648
    %v1663 = vld [vmem:[%s4] sm:$0xf]
    %v1664 = vld [vmem:[%s4 + $0x4] sm:$0xf]
    %1665 = vxpose.xlu0.c.b16.start [1/8] %v1662, 128
    %1666 = vxpose.xlu0.c.b16.cont [2/8] 0, 128
    %1667 = vxpose.xlu0.c.b16.cont [3/8] 0, 128
    %1668 = vxpose.xlu0.c.b16.cont [4/8] 0, 128
    %1669 = vxpose.xlu0.c.b16.cont [5/8] 0, 128
    %1670 = vxpose.xlu0.c.b16.cont [6/8] 0, 128
    %1671 = vxpose.xlu0.c.b16.cont [7/8] 0, 128
    %1672 = vxpose.xlu0.c.b16.end [8/8] 0, 128
    %v1673 = vpop.trf.xlu0
    %v1674 = vpop.trf.xlu0
    %v1675 = vpop.trf.xlu0
    %v1676 = vpop.trf.xlu0
    %v1677 = vpop.trf.xlu0
    %v1678 = vpop.trf.xlu0
    %v1679 = vpop.trf.xlu0
    %v1680 = vpop.trf.xlu0
    %v1683 = vunpack.c.l.b16 %v1663
    %v1684 = vunpack.c.l.b16 %v1664
    %v1685 = vpack.c.b16 %v1684, %v1683
    %vm1687 = vcmask 130048
    %v1689 = vsel %vm1687, %v1673, 0
    %v1692 = vsel %vm1687, %v1674, 0
    %1694 = vmatprep.subr.bf16.mxu0 0
    %1695 = vmatpush1.bf16.msra.mxu0 0
    %1696 = vmatprep.subr.bf16.mxu0 0
    %1697 = vmatpush1.bf16.msra.mxu0 0
    %1698 = vmatprep.subr.bf16.mxu0 0
    %1699 = vmatpush1.bf16.msra.mxu0 0
    %1700 = vmatprep.subr.bf16.mxu0 0
    %1701 = vmatpush1.bf16.msra.mxu0 0
    %1702 = vmatprep.subr.bf16.mxu0 0
    %1703 = vmatpush1.bf16.msra.mxu0 0
    %1704 = vmatprep.subr.bf16.mxu0 0
    %1705 = vmatpush1.bf16.msra.mxu0 0
    %1706 = vmatprep.subr.bf16.mxu0 0
    %1707 = vmatpush1.bf16.msra.mxu0 0
    %1708 = vmatprep.subr.bf16.mxu0 0
    %1709 = vmatpush1.bf16.msra.mxu0 %v1685
    %1710 = vmatprep.subr.bf16.mxu0 0
    %1711 = vmatpush2.bf16.msra.mxu0 0
    %1712 = vmatprep.subr.bf16.mxu0 0
    %1713 = vmatpush2.bf16.msra.mxu0 0
    %1714 = vmatprep.subr.bf16.mxu0 0
    %1715 = vmatpush2.bf16.msra.mxu0 0
    %1716 = vmatprep.subr.bf16.mxu0 0
    %1717 = vmatpush2.bf16.msra.mxu0 0
    %1718 = vmatprep.subr.bf16.mxu0 0
    %1719 = vmatpush2.bf16.msra.mxu0 0
    %1720 = vmatprep.subr.bf16.mxu0 0
    %1721 = vmatpush2.bf16.msra.mxu0 0
    %1722 = vmatprep.subr.bf16.mxu0 0
    %1723 = vmatpush2.bf16.msra.mxu0 0
    %1724 = vmatprep.subr.bf16.mxu0 0
    %1725 = vmatpush2.bf16.msra.mxu0 0
    %1726 = vmatprep.mubr.bf16.mxu0 0
    %1727 = vmatmul.mubr.bf16.gmra.mxu0 %v1689
    %v1728 = vpop.f32.mrf.mxu0
    %v1729 = vadd.f32 0.0, %v1728
    %v1730 = vpop.f32.mrf.mxu0
    %v1731 = vpop.f32.mrf.mxu0
    %v1732 = vadd.f32 0.0, %v1731
    %v1733 = vpop.f32.mrf.mxu0
    %1734 = vmatprep.mubr.bf16.mxu0 0
    %1735 = vmatmul.mubr.bf16.gmra.mxu0 %v1692
    %v1736 = vpop.f32.mrf.mxu0
    %v1737 = vadd.f32 0.0, %v1736
    %v1738 = vpop.f32.mrf.mxu0
    %v1739 = vpop.f32.mrf.mxu0
    %v1740 = vadd.f32 0.0, %v1739
    %v1741 = vpop.f32.mrf.mxu0
    %1742 = vdwg.mxu0
    %v1743 = vpack.c.bf16 %v1732, %v1729
    %v1744 = vpack.c.bf16 %v1740, %v1737
    %v1745 = vpack.c.bf16 %v286, %v283
    %v1746 = vpack.c.bf16 %v294, %v291
    %1748 = vset.pattern.permute.xlu0 0
    %1749 = vperm.xlu0 %1748, %v1658
    %v1750 = vpop.permute.xlu0 %1749
    %1753 = vset.pattern.permute.xlu0 0
    %1754 = vperm.xlu0 %1753, %v1659
    %v1755 = vpop.permute.xlu0 %1754
    %1758 = vset.pattern.permute.xlu0 0
    %1759 = vperm.xlu0 %1758, %v1660
    %v1760 = vpop.permute.xlu0 %1759
    %1763 = vset.pattern.permute.xlu0 0
    %1764 = vperm.xlu0 %1763, %v1661
    %v1765 = vpop.permute.xlu0 %1764
    %v1775 = vunpack.c.l.b16 %v1650
    %v1776 = vunpack.c.l.b16 %v1651
    %v1777 = vunpack.c.l.b16 %v1652
    %v1778 = vunpack.c.l.b16 %v1653
    %v1779 = vunpack.c.l.b16 %v1654
    %v1780 = vunpack.c.l.b16 %v1655
    %v1781 = vunpack.c.l.b16 %v1656
    %v1782 = vunpack.c.l.b16 %v1657
    %v1783 = vpack.c.b16 %v1776, %v1775
    %v1784 = vpack.c.b16 %v1778, %v1777
    %v1785 = vpack.c.b16 %v1780, %v1779
    %v1786 = vpack.c.b16 %v1782, %v1781
    %1791 = vxpose.xlu0.c.b16.start [1/8] %v1783, 128
    %1792 = vxpose.xlu0.c.b16.cont [2/8] %v1784, 128
    %1793 = vxpose.xlu0.c.b16.cont [3/8] %v1785, 128
    %1794 = vxpose.xlu0.c.b16.cont [4/8] %v1786, 128
    %1795 = vxpose.xlu0.c.b16.cont [5/8] 0, 128
    %1796 = vxpose.xlu0.c.b16.cont [6/8] 0, 128
    %1797 = vxpose.xlu0.c.b16.cont [7/8] 0, 128
    %1798 = vxpose.xlu0.c.b16.end [8/8] 0, 128
    %v1799 = vpop.trf.xlu0
    %v1800 = vpop.trf.xlu0
    %v1801 = vpop.trf.xlu0
    %v1802 = vpop.trf.xlu0
    %v1803 = vpop.trf.xlu0
    %v1804 = vpop.trf.xlu0
    %v1805 = vpop.trf.xlu0
    %v1806 = vpop.trf.xlu0
    %vm1807 = vcmask 523264
    %v1809 = vsel %vm1807, %v1799, 0
    %v1812 = vsel %vm1807, %v1800, 0
    %1814 = vmatprep.subr.bf16.mxu0 0
    %1815 = vmatpush1.bf16.msra.mxu0 0
    %1816 = vmatprep.subr.bf16.mxu0 0
    %1817 = vmatpush1.bf16.msra.mxu0 0
    %1818 = vmatprep.subr.bf16.mxu0 0
    %1819 = vmatpush1.bf16.msra.mxu0 0
    %1820 = vmatprep.subr.bf16.mxu0 0
    %1821 = vmatpush1.bf16.msra.mxu0 0
    %1822 = vmatprep.subr.bf16.mxu0 0
    %1823 = vmatpush1.bf16.msra.mxu0 %v1746
    %1824 = vmatprep.subr.bf16.mxu0 0
    %1825 = vmatpush1.bf16.msra.mxu0 %v1745
    %1826 = vmatprep.subr.bf16.mxu0 0
    %1827 = vmatpush1.bf16.msra.mxu0 %v1744
    %1828 = vmatprep.subr.bf16.mxu0 0
    %1829 = vmatpush1.bf16.msra.mxu0 %v1743
    %1830 = vmatprep.subr.bf16.mxu0 0
    %1831 = vmatpush2.bf16.msra.mxu0 0
    %1832 = vmatprep.subr.bf16.mxu0 0
    %1833 = vmatpush2.bf16.msra.mxu0 0
    %1834 = vmatprep.subr.bf16.mxu0 0
    %1835 = vmatpush2.bf16.msra.mxu0 0
    %1836 = vmatprep.subr.bf16.mxu0 0
    %1837 = vmatpush2.bf16.msra.mxu0 0
    %1838 = vmatprep.subr.bf16.mxu0 0
    %1839 = vmatpush2.bf16.msra.mxu0 0
    %1840 = vmatprep.subr.bf16.mxu0 0
    %1841 = vmatpush2.bf16.msra.mxu0 0
    %1842 = vmatprep.subr.bf16.mxu0 0
    %1843 = vmatpush2.bf16.msra.mxu0 0
    %1844 = vmatprep.subr.bf16.mxu0 0
    %1845 = vmatpush2.bf16.msra.mxu0 0
    %1846 = vmatprep.mubr.bf16.mxu0 0
    %1847 = vmatmul.mubr.bf16.gmra.mxu0 %v1809
    %v1848 = vpop.f32.mrf.mxu0
    %v1849 = vadd.f32 %v1750, %v1848
    %v1850 = vpop.f32.mrf.mxu0
    %v1851 = vpop.f32.mrf.mxu0
    %v1852 = vadd.f32 %v1755, %v1851
    %v1853 = vpop.f32.mrf.mxu0
    %1854 = vmatprep.mubr.bf16.mxu0 0
    %1855 = vmatmul.mubr.bf16.gmra.mxu0 %v1812
    %v1856 = vpop.f32.mrf.mxu0
    %v1857 = vadd.f32 %v1760, %v1856
    %v1858 = vpop.f32.mrf.mxu0
    %v1859 = vpop.f32.mrf.mxu0
    %v1860 = vadd.f32 %v1765, %v1859
    %v1861 = vpop.f32.mrf.mxu0
    %1862 = vdwg.mxu0
    %v1863 = vmax.f32 %v1849, 0.0
    %v1864 = vmax.f32 %v1852, 0.0
    %v1865 = vmax.f32 %v1857, 0.0
    %v1866 = vmax.f32 %v1860, 0.0
    %v1867 = vpack.c.bf16 %v1864, %v1863
    %v1868 = vpack.c.bf16 %v1866, %v1865
    %1869 = vset.pattern.permute.xlu0 1
    %1870 = vperm.xlu0 %1869, %v1658
    %v1871 = vpop.permute.xlu0 %1870
    %1873 = vset.pattern.permute.xlu0 1
    %1874 = vperm.xlu0 %1873, %v1659
    %v1875 = vpop.permute.xlu0 %1874
    %1877 = vrot.lane.b32.xlu0 %v1783, 96
    %v1878 = vpop.permute.xlu0 %1877
    %1879 = vrot.lane.b32.xlu0 %v1784, 96
    %v1880 = vpop.permute.xlu0 %1879
    %1883 = vxpose.xlu0.c.b16.start [1/8] %v1878, 128
    %1884 = vxpose.xlu0.c.b16.cont [2/8] %v1880, 128
    %1885 = vxpose.xlu0.c.b16.cont [3/8] 0, 128
    %1886 = vxpose.xlu0.c.b16.cont [4/8] 0, 128
    %1887 = vxpose.xlu0.c.b16.cont [5/8] 0, 128
    %1888 = vxpose.xlu0.c.b16.cont [6/8] 0, 128
    %1889 = vxpose.xlu0.c.b16.cont [7/8] 0, 128
    %1890 = vxpose.xlu0.c.b16.end [8/8] 0, 128
    %v1891 = vpop.trf.xlu0
    %v1892 = vpop.trf.xlu0
    %v1893 = vpop.trf.xlu0
    %v1894 = vpop.trf.xlu0
    %v1895 = vpop.trf.xlu0
    %v1896 = vpop.trf.xlu0
    %v1897 = vpop.trf.xlu0
    %v1898 = vpop.trf.xlu0
    %v1900 = vsel %vm315, %v1891, 0
    %1902 = vmatprep.subr.bf16.mxu0 0
    %1903 = vmatpush1.bf16.msra.mxu0 0
    %1904 = vmatprep.subr.bf16.mxu0 0
    %1905 = vmatpush1.bf16.msra.mxu0 0
    %1906 = vmatprep.subr.bf16.mxu0 0
    %1907 = vmatpush1.bf16.msra.mxu0 0
    %1908 = vmatprep.subr.bf16.mxu0 0
    %1909 = vmatpush1.bf16.msra.mxu0 0
    %1910 = vmatprep.subr.bf16.mxu0 0
    %1911 = vmatpush1.bf16.msra.mxu0 0
    %1912 = vmatprep.subr.bf16.mxu0 0
    %1913 = vmatpush1.bf16.msra.mxu0 0
    %1914 = vmatprep.subr.bf16.mxu0 0
    %1915 = vmatpush1.bf16.msra.mxu0 %v1868
    %1916 = vmatprep.subr.bf16.mxu0 0
    %1917 = vmatpush1.bf16.msra.mxu0 %v1867
    %1918 = vmatprep.subr.bf16.mxu0 0
    %1919 = vmatpush2.bf16.msra.mxu0 0
    %1920 = vmatprep.subr.bf16.mxu0 0
    %1921 = vmatpush2.bf16.msra.mxu0 0
    %1922 = vmatprep.subr.bf16.mxu0 0
    %1923 = vmatpush2.bf16.msra.mxu0 0
    %1924 = vmatprep.subr.bf16.mxu0 0
    %1925 = vmatpush2.bf16.msra.mxu0 0
    %1926 = vmatprep.subr.bf16.mxu0 0
    %1927 = vmatpush2.bf16.msra.mxu0 0
    %1928 = vmatprep.subr.bf16.mxu0 0
    %1929 = vmatpush2.bf16.msra.mxu0 0
    %1930 = vmatprep.subr.bf16.mxu0 0
    %1931 = vmatpush2.bf16.msra.mxu0 0
    %1932 = vmatprep.subr.bf16.mxu0 0
    %1933 = vmatpush2.bf16.msra.mxu0 0
    %1934 = vmatprep.mubr.bf16.mxu0 0
    %1935 = vmatmul.mubr.bf16.gmra.mxu0 %v1900
    %v1936 = vpop.f32.mrf.mxu0
    %v1937 = vadd.f32 %v1871, %v1936
    %v1938 = vpop.f32.mrf.mxu0
    %v1939 = vpop.f32.mrf.mxu0
    %v1940 = vadd.f32 %v1875, %v1939
    %v1941 = vpop.f32.mrf.mxu0
    %1942 = vdwg.mxu0
    %v1943 = vmax.f32 %v1937, 0.0
    %v1944 = vmax.f32 %v1940, 0.0
    %v1945 = vpack.c.bf16 %v1944, %v1943
    %1946 = vset.pattern.permute.xlu0 2
    %1947 = vperm.xlu0 %1946, %v1658
    %v1948 = vpop.permute.xlu0 %1947
    %1950 = vrot.lane.b32.xlu0 %v1783, 80
    %v1951 = vpop.permute.xlu0 %1950
    %1953 = vxpose.xlu0.c.b16.start [1/8] %v1951, 128
    %1954 = vxpose.xlu0.c.b16.cont [2/8] 0, 128
    %1955 = vxpose.xlu0.c.b16.cont [3/8] 0, 128
    %1956 = vxpose.xlu0.c.b16.cont [4/8] 0, 128
    %1957 = vxpose.xlu0.c.b16.cont [5/8] 0, 128
    %1958 = vxpose.xlu0.c.b16.cont [6/8] 0, 128
    %1959 = vxpose.xlu0.c.b16.cont [7/8] 0, 128
    %1960 = vxpose.xlu0.c.b16.end [8/8] 0, 128
    %v1961 = vpop.trf.xlu0
    %v1962 = vpop.trf.xlu0
    %v1963 = vpop.trf.xlu0
    %v1964 = vpop.trf.xlu0
    %v1965 = vpop.trf.xlu0
    %v1966 = vpop.trf.xlu0
    %v1967 = vpop.trf.xlu0
    %v1968 = vpop.trf.xlu0
    %v1970 = vsel %vm1687, %v1961, 0
    %1972 = vmatprep.subr.bf16.mxu0 0
    %1973 = vmatpush1.bf16.msra.mxu0 0
    %1974 = vmatprep.subr.bf16.mxu0 0
    %1975 = vmatpush1.bf16.msra.mxu0 0
    %1976 = vmatprep.subr.bf16.mxu0 0
    %1977 = vmatpush1.bf16.msra.mxu0 0
    %1978 = vmatprep.subr.bf16.mxu0 0
    %1979 = vmatpush1.bf16.msra.mxu0 0
    %1980 = vmatprep.subr.bf16.mxu0 0
    %1981 = vmatpush1.bf16.msra.mxu0 0
    %1982 = vmatprep.subr.bf16.mxu0 0
    %1983 = vmatpush1.bf16.msra.mxu0 0
    %1984 = vmatprep.subr.bf16.mxu0 0
    %1985 = vmatpush1.bf16.msra.mxu0 0
    %1986 = vmatprep.subr.bf16.mxu0 0
    %1987 = vmatpush1.bf16.msra.mxu0 %v1945
    %1988 = vmatprep.subr.bf16.mxu0 0
    %1989 = vmatpush2.bf16.msra.mxu0 0
    %1990 = vmatprep.subr.bf16.mxu0 0
    %1991 = vmatpush2.bf16.msra.mxu0 0
    %1992 = vmatprep.subr.bf16.mxu0 0
    %1993 = vmatpush2.bf16.msra.mxu0 0
    %1994 = vmatprep.subr.bf16.mxu0 0
    %1995 = vmatpush2.bf16.msra.mxu0 0
    %1996 = vmatprep.subr.bf16.mxu0 0
    %1997 = vmatpush2.bf16.msra.mxu0 0
    %1998 = vmatprep.subr.bf16.mxu0 0
    %1999 = vmatpush2.bf16.msra.mxu0 0
    %2000 = vmatprep.subr.bf16.mxu0 0
    %2001 = vmatpush2.bf16.msra.mxu0 0
    %2002 = vmatprep.subr.bf16.mxu0 0
    %2003 = vmatpush2.bf16.msra.mxu0 0
    %2004 = vmatprep.mubr.bf16.mxu0 0
    %2005 = vmatmul.mubr.bf16.gmra.mxu0 %v1970
    %v2006 = vpop.f32.mrf.mxu0
    %v2007 = vadd.f32 %v1948, %v2006
    %v2008 = vpop.f32.mrf.mxu0
    %v2009 = vpop.f32.mrf.mxu0
    %v2010 = vpop.f32.mrf.mxu0
    %2011 = vdwg.mxu0
    %vm2012 = vcmask 8192
    %2013 = vst.msk [vmem:[#allocation7] sm:$0x1] %vm2012, %v2007
    // Predicated region
    $region54: #{tpu_custom_call.1} parent=1 // pred_check
      _
    $region55: #{tpu_custom_call.1} parent=1 // pred_check_branch
      %2015 = sbr.rel (0) target = $region57
    $region56: #{tpu_custom_call.1} parent=1 // pred_region
      %s2017 = ssub.s32 16, 16
      %2018 = vsyncadd [#allocation4], %s2017
      %s2020 = sshll.u32 [#allocation7], 4
      %s2021 = int_to_ptr.vmem [resolvable:$true] %s2020
      %2023 = dma.vmem_to_hbm [thread:$0]  %s2021, 16, %s11, [#allocation4]
    $region57: #{tpu_custom_call.1} parent=1 // pred_fallthru
      _
    // Predicated region
    $region58: #{tpu_custom_call.1} parent=1 // pred_check
      _
    $region59: #{tpu_custom_call.1} parent=1 // pred_check_branch
      %2025 = sbr.rel (0) target = $region61
    $region60: #{tpu_custom_call.1} parent=1 // pred_region
      %2026 = dma.done [#allocation4], 16
    $region61: #{tpu_custom_call.1} parent=1 // pred_fallthru
      _
    %2027 = vsyncpa [#allocation3], 1
    %2028 = vsyncpa [#allocation6], 1
    %2029 = vsyncpa [#allocation4], 1

</llo_original>
